<compile_context>
chip_gen: v7x
topology: tpu7x:2x2x1
jax: 0.10.0
libtpu: 0.0.40
codegen_flags: <defaults>
</compile_context>

<pallas_src>
import functools
import math

import jax
import jax.numpy as jnp
from jax.experimental import pallas as pl
from jax.experimental.pallas import tpu as pltpu

PAD_TOKEN = 1
LN_EPS = 1e-5
NEG_INF = -1e9
VMEM_LIMIT = 48 * 1024 * 1024          # v7x physical VMEM is 64 MiB; leave headroom


def _round_up(x, m):
    return (x + m - 1) // m * m


def _pick_row_tile(r, cap=512):
    t = min(r, cap)
    t -= t % 8
    while r % t != 0:
        t -= 8
    return t


def _pick_batch_tile(b, s, row_cap=512):
    tb = max(1, min(b, row_cap // s))
    while b % tb != 0:
        tb -= 1
    return tb


def _pick_vocab_tile(v_pad, cap=1024):
    for tv in (1024, 512, 256, 128):
        if tv <= cap and v_pad % tv == 0:
            return tv
    return v_pad


# ----------------------------- in-kernel helpers -----------------------------
def _layer_norm(x, w, b):
    mu = jnp.mean(x, axis=-1, keepdims=True)
    xc = x - mu
    var = jnp.mean(xc * xc, axis=-1, keepdims=True)
    return xc * jax.lax.rsqrt(var + LN_EPS) * w + b


def _gelu(x):
    # exact (erf) GELU, matching PyTorch activation='gelu' default
    return 0.5 * x * (1.0 + jax.lax.erf(x * (1.0 / math.sqrt(2.0))))


# ------------------------ prologue: emb + PE + pre-LN -------------------------
def prologue_kernel(emb_ref, pe_ref, w_ref, b_ref, out_ref):
    out_ref[...] = _layer_norm(emb_ref[...] + pe_ref[...], w_ref[...], b_ref[...])


# ------------------- fused transformer stack (one pallas_call) ----------------
def layers_kernel(x0_ref, bias_ref,
                  wqkv_ref, bqkv_ref, wo_ref, bo_ref, ln1w_ref, ln1b_ref,
                  w1_ref, b1_ref, w2_ref, b2_ref, ln2w_ref, ln2b_ref,
                  out_ref, *, num_heads, seq):
    # grid = (batch_blocks, num_layers); activations carried in the output block
    @pl.when(pl.program_id(1) == 0)
    def _():
        out_ref[...] = x0_ref[...]

    x = out_ref[...]                                 # (TR, H) f32, VMEM-resident
    TR, H = x.shape
    NH, S = num_heads, seq
    TB, DH = TR // S, H // NH
    G = NH * TB
    scale = 1.0 / math.sqrt(DH)
    bf16 = jnp.bfloat16

    # fused QKV projection: one lane-dense (TR,H)@(H,3H) MXU matmul
    qkv = jnp.dot(x.astype(bf16), wqkv_ref[...],
                  preferred_element_type=jnp.float32) + bqkv_ref[...]
    qkv_b = qkv.astype(bf16)

    def split_heads(col0):
        # (TR, H-slice) -> (NH*TB, S, DH); static lane slices + major-dim reshapes
        parts = [qkv_b[:, col0 + n * DH: col0 + (n + 1) * DH].reshape(TB, S, DH)
                 for n in range(NH)]
        return jnp.concatenate(parts, axis=0)

    q = split_heads(0)
    k = split_heads(H)
    v = split_heads(2 * H)

    # key-padding bias replicated over heads to match the (NH, TB) group ordering
    key_bias = jnp.broadcast_to(bias_ref[...][None], (NH, TB, 1, S)).reshape(G, 1, S)

    # batched attention over the collapsed (head, batch) group dim
    s = jnp.einsum("gqd,gkd->gqk", q, k,
                   preferred_element_type=jnp.float32)            # (G, S, S)
    s = s * scale + key_bias
    s = s - jnp.max(s, axis=-1, keepdims=True)
    p = jnp.exp(s)
    p = p * pl.reciprocal(jnp.sum(p, axis=-1, keepdims=True), approx=True)

    o = jnp.einsum("gqk,gkd->gqd", p.astype(bf16), v,
                   preferred_element_type=jnp.float32)            # (G, S, DH)

    # merge heads back to (TR, H) and do a single full-H output projection
    o_heads = [o[n * TB:(n + 1) * TB].reshape(TR, DH) for n in range(NH)]
    o_cat = jnp.concatenate(o_heads, axis=1).astype(bf16)         # (TR, H)
    attn = jnp.dot(o_cat, wo_ref[...],
                   preferred_element_type=jnp.float32) + bo_ref[...]

    # post-norm residual block 1
    y = _layer_norm(x + attn, ln1w_ref[...], ln1b_ref[...])

    # feed-forward (bf16 MXU inputs, f32 accumulation)
    h1 = jnp.dot(y.astype(bf16), w1_ref[...],
                 preferred_element_type=jnp.float32) + b1_ref[...]
    h1 = _gelu(h1)
    h2 = jnp.dot(h1.astype(bf16), w2_ref[...],
                 preferred_element_type=jnp.float32) + b2_ref[...]

    # post-norm residual block 2 -> carried to the next layer
    out_ref[...] = _layer_norm(y + h2, ln2w_ref[...], ln2b_ref[...])


# ----------------------------- output head kernels -----------------------------
def head_hidden_kernel(x_ref, pnw_ref, pnb_ref, wf_ref, bf_ref,
                       lfw_ref, lfb_ref, h_ref):
    x = _layer_norm(x_ref[...], pnw_ref[...], pnb_ref[...])
    h = jnp.dot(x.astype(jnp.bfloat16), wf_ref[...],
                preferred_element_type=jnp.float32) + bf_ref[...]
    h_ref[...] = _layer_norm(_gelu(h), lfw_ref[...], lfb_ref[...]).astype(jnp.bfloat16)


def logits_kernel(h_ref, w_ref, b_ref, out_ref):
    out_ref[...] = (jnp.dot(h_ref[...], w_ref[...],
                            preferred_element_type=jnp.float32) + b_ref[...])


# ------------------------------ pallas wrappers --------------------------------
def _const_spec(shape):
    nd = len(shape)
    return pl.BlockSpec(tuple(shape), lambda *idx, _n=nd: (0,) * _n)


def _stacked_spec(shape):
    nd = len(shape)
    return pl.BlockSpec((None,) + tuple(shape[1:]),
                        lambda b, l, _n=nd: (l,) + (0,) * (_n - 1))


_LAYER_KEYS = ("wqkv", "bqkv", "wo", "bo", "ln1_w", "ln1_b",
               "w1", "b1", "w2", "b2", "ln2_w", "ln2_b")


def run_prologue(emb_rows, pe_rows, pre_w, pre_b):
    R, H = emb_rows.shape
    TR = _pick_row_tile(R)
    row = pl.BlockSpec((TR, H), lambda r: (r, 0))
    return pl.pallas_call(
        prologue_kernel,
        grid=(R // TR,),
        in_specs=[row, row, _const_spec(pre_w.shape), _const_spec(pre_b.shape)],
        out_specs=row,
        out_shape=jax.ShapeDtypeStruct((R, H), jnp.float32),
        compiler_params=pltpu.CompilerParams(
            dimension_semantics=("parallel",), vmem_limit_bytes=VMEM_LIMIT),
    )(emb_rows, pe_rows, pre_w, pre_b)


def run_layers(x0, key_bias, stacked, num_heads, batch, seq):
    R, H = x0.shape
    L = stacked["wqkv"].shape[0]
    TB = _pick_batch_tile(batch, seq)
    TR = TB * seq
    NB = batch // TB

    weights = tuple(stacked[k] for k in _LAYER_KEYS)
    in_specs = [pl.BlockSpec((TR, H), lambda b, l: (b, 0)),
                pl.BlockSpec((TB, 1, seq), lambda b, l: (b, 0, 0))]
    in_specs += [_stacked_spec(w.shape) for w in weights]
    kernel = functools.partial(layers_kernel, num_heads=num_heads, seq=seq)
    return pl.pallas_call(
        kernel,
        grid=(NB, L),
        in_specs=in_specs,
        out_specs=pl.BlockSpec((TR, H), lambda b, l: (b, 0)),
        out_shape=jax.ShapeDtypeStruct((R, H), jnp.float32),
        compiler_params=pltpu.CompilerParams(
            dimension_semantics=("parallel", "arbitrary"),
            vmem_limit_bytes=VMEM_LIMIT),
    )(x0, key_bias, *weights)


def run_output_head(x, post_w, post_b, w_f, b_f, ln_f_w, ln_f_b, w_out, b_out):
    R, H = x.shape
    Vp = w_out.shape[1]
    TR = _pick_row_tile(R)
    NR = R // TR
    row = pl.BlockSpec((TR, H), lambda r: (r, 0))

    # hidden = LN_f(GELU(post_LN(x) @ W_f + b_f)) computed once, row-tiled
    h = pl.pallas_call(
        head_hidden_kernel,
        grid=(NR,),
        in_specs=[row] + [_const_spec(a.shape) for a in
                          (post_w, post_b, w_f, b_f, ln_f_w, ln_f_b)],
        out_specs=row,
        out_shape=jax.ShapeDtypeStruct((R, H), jnp.bfloat16),
        compiler_params=pltpu.CompilerParams(
            dimension_semantics=("parallel",), vmem_limit_bytes=VMEM_LIMIT),
    )(x, post_w, post_b, w_f, b_f, ln_f_w, ln_f_b)

    # independent (row, vocab) tiles -> fully parallel grid (megacore-friendly)
    TV = _pick_vocab_tile(Vp)
    NV = Vp // TV
    return pl.pallas_call(
        logits_kernel,
        grid=(NR, NV),
        in_specs=[pl.BlockSpec((TR, H), lambda r, v: (r, 0)),
                  pl.BlockSpec((H, TV), lambda r, v: (0, v)),
                  pl.BlockSpec((1, TV), lambda r, v: (0, v))],
        out_specs=pl.BlockSpec((TR, TV), lambda r, v: (r, v)),
        out_shape=jax.ShapeDtypeStruct((R, Vp), jnp.float32),
        compiler_params=pltpu.CompilerParams(
            dimension_semantics=("parallel", "parallel"),
            vmem_limit_bytes=VMEM_LIMIT),
    )(h, w_out, b_out)


# ----------------------------- params / forward -------------------------------
def sinusoidal_pe(max_len, d_model):
    pos = jnp.arange(max_len, dtype=jnp.float32)[:, None]
    div = jnp.exp(jnp.arange(0, d_model, 2, dtype=jnp.float32) *
                  (-math.log(10000.0) / d_model))
    pe = jnp.zeros((max_len, d_model), jnp.float32)
    pe = pe.at[:, 0::2].set(jnp.sin(pos * div))
    pe = pe.at[:, 1::2].set(jnp.cos(pos * div))
    return pe


def init_params(key, num_items, hidden, num_layers, max_len):
    def normal(k, shape):
        return 0.02 * jax.random.normal(k, shape, jnp.float32)

    ks = iter(jax.random.split(key, 8 + 8 * num_layers))
    params = {
        "emb": normal(next(ks), (num_items, hidden)),
        "pe": sinusoidal_pe(max_len, hidden),
        "pre_ln_w": jnp.ones((1, hidden), jnp.float32),
        "pre_ln_b": jnp.zeros((1, hidden), jnp.float32),
        "post_ln_w": jnp.ones((1, hidden), jnp.float32),
        "post_ln_b": jnp.zeros((1, hidden), jnp.float32),
        "w_f": normal(next(ks), (hidden, hidden)),
        "b_f": jnp.zeros((1, hidden), jnp.float32),
        "ln_f_w": jnp.ones((1, hidden), jnp.float32),
        "ln_f_b": jnp.zeros((1, hidden), jnp.float32),
        "w_out": normal(next(ks), (hidden, num_items)),
        "b_out": jnp.zeros((1, num_items), jnp.float32),
        "layers": [],
    }
    ff = hidden * 4
    for _ in range(num_layers):
        lp = {
            "wq": normal(next(ks), (hidden, hidden)),
            "bq": jnp.zeros((1, hidden), jnp.float32),
            "wk": normal(next(ks), (hidden, hidden)),
            "bk": jnp.zeros((1, hidden), jnp.float32),
            "wv": normal(next(ks), (hidden, hidden)),
            "bv": jnp.zeros((1, hidden), jnp.float32),
            "wo": normal(next(ks), (hidden, hidden)),
            "bo": jnp.zeros((1, hidden), jnp.float32),
            "ln1_w": jnp.ones((1, hidden), jnp.float32),
            "ln1_b": jnp.zeros((1, hidden), jnp.float32),
            "w1": normal(next(ks), (hidden, ff)),
            "b1": jnp.zeros((1, ff), jnp.float32),
            "w2": normal(next(ks), (ff, hidden)),
            "b2": jnp.zeros((1, hidden), jnp.float32),
            "ln2_w": jnp.ones((1, hidden), jnp.float32),
            "ln2_b": jnp.zeros((1, hidden), jnp.float32),
        }
        params["layers"].append(lp)
    return params


def prepare_weights(params):
    """One-time (model-load) prep: stack layers on a leading L axis, fuse QKV,
    cast matmul weights to bf16, pad the vocab to a lane-dense multiple of 128.
    Done OUTSIDE jit so no per-call weight reshuffling/HBM traffic."""
    bf16 = jnp.bfloat16
    layers = params["layers"]

    def stk(name):
        return jnp.stack([lp[name] for lp in layers], axis=0)

    stacked = {
        "wqkv": jnp.concatenate([stk("wq"), stk("wk"), stk("wv")],
                                axis=2).astype(bf16),          # (L, H, 3H)
        "bqkv": jnp.concatenate([stk("bq"), stk("bk"), stk("bv")], axis=2),
        "wo": stk("wo").astype(bf16), "bo": stk("bo"),
        "ln1_w": stk("ln1_w"), "ln1_b": stk("ln1_b"),
        "w1": stk("w1").astype(bf16), "b1": stk("b1"),
        "w2": stk("w2").astype(bf16), "b2": stk("b2"),
        "ln2_w": stk("ln2_w"), "ln2_b": stk("ln2_b"),
    }

    V = params["w_out"].shape[1]
    Vp = _round_up(V, 128)
    return {
        "emb": params["emb"], "pe": params["pe"],
        "pre_ln_w": params["pre_ln_w"], "pre_ln_b": params["pre_ln_b"],
        "post_ln_w": params["post_ln_w"], "post_ln_b": params["post_ln_b"],
        "w_f": params["w_f"].astype(bf16), "b_f": params["b_f"],
        "ln_f_w": params["ln_f_w"], "ln_f_b": params["ln_f_b"],
        "w_out": jnp.pad(params["w_out"], ((0, 0), (0, Vp - V))).astype(bf16),
        "b_out": jnp.pad(params["b_out"], ((0, 0), (0, Vp - V))),
        "layers": stacked,
    }


def bert4rec_forward(prep, input_ids, *, num_heads, num_items):
    B, S0 = input_ids.shape
    H = prep["emb"].shape[1]
    assert H % num_heads == 0

    # pad the sequence to a sublane multiple; padded keys are masked out below
    S = _round_up(S0, 8)
    assert S <= prep["pe"].shape[0]
    if S != S0:
        input_ids = jnp.pad(input_ids, ((0, 0), (0, S - S0)),
                            constant_values=PAD_TOKEN)
    R = B * S

    # glue handled by XLA: embedding gather + PE replication + key-padding bias
    # TODO(synk): the embedding gather itself stays outside Pallas (jnp.take).
    emb_rows = jnp.take(prep["emb"], input_ids, axis=0).reshape(R, H)
    pe_rows = jnp.broadcast_to(prep["pe"][:S][None], (B, S, H)).reshape(R, H)
    key_bias = jnp.where(input_ids != PAD_TOKEN, 0.0, NEG_INF
                         ).astype(jnp.float32)[:, None, :]          # (B, 1, S)

    x0 = run_prologue(emb_rows, pe_rows, prep["pre_ln_w"], prep["pre_ln_b"])
    x = run_layers(x0, key_bias, prep["layers"], num_heads, B, S)
    logits_rows = run_output_head(
        x, prep["post_ln_w"], prep["post_ln_b"], prep["w_f"], prep["b_f"],
        prep["ln_f_w"], prep["ln_f_b"], prep["w_out"], prep["b_out"])

    Vp = prep["w_out"].shape[1]
    logits = logits_rows.reshape(B, S, Vp)[:, :S0, :num_items]
    return logits


# ----------------------------------- main --------------------------------------
if __name__ == "__main__":
    B, S = 2, 8
    NUM_ITEMS, HIDDEN, NUM_HEADS, NUM_LAYERS, MAX_LEN = 64, 32, 2, 2, 50

    key = jax.random.PRNGKey(0)
    k_ids, k_params = jax.random.split(key)

    input_ids = jax.random.randint(k_ids, (B, S), 0, NUM_ITEMS, dtype=jnp.int32)
    # introduce some padding positions (but never a fully padded sequence)
    input_ids = input_ids.at[:, -2:].set(PAD_TOKEN)
    input_ids = input_ids.at[:, 0].set(5)

    params = init_params(k_params, NUM_ITEMS, HIDDEN, NUM_LAYERS, MAX_LEN)
    prep = prepare_weights(params)            # one-time, outside jit

    forward = jax.jit(functools.partial(bert4rec_forward,
                                        num_heads=NUM_HEADS,
                                        num_items=NUM_ITEMS))
    logits = forward(prep, input_ids)
    logits = jax.block_until_ready(logits)

    assert logits.shape == (B, S, NUM_ITEMS), logits.shape
    assert bool(jnp.all(jnp.isfinite(logits))), "non-finite logits"
    print("KERNEL_OK")
</pallas_src>

<mosaic_0001>
module attributes {stable_mosaic.version = 11 : i64} {
  func.func @prologue_kernel(%arg0: i32, %arg1: memref<16x32xf32, #tpu.memory_space<vmem>>, %arg2: memref<16x32xf32, #tpu.memory_space<vmem>>, %arg3: memref<1x32xf32, #tpu.memory_space<vmem>>, %arg4: memref<1x32xf32, #tpu.memory_space<vmem>>, %arg5: memref<16x32xf32, #tpu.memory_space<vmem>>) attributes {dimension_semantics = [#tpu.dimension_semantics<parallel>], iteration_bounds = array<i64: 1>, scalar_prefetch = 0 : i64, scratch_operands = 0 : i64, tpu.core_type = #tpu.core_type<tc>, window_params = [{transform_indices = @transform_0, window_bounds = array<i64: 16, 32>}, {transform_indices = @transform_1, window_bounds = array<i64: 16, 32>}, {pipeline_mode = #tpu.pipeline_mode<synchronous>, transform_indices = @transform_2, window_bounds = array<i64: 1, 32>}, {pipeline_mode = #tpu.pipeline_mode<synchronous>, transform_indices = @transform_3, window_bounds = array<i64: 1, 32>}, {transform_indices = @transform_4, window_bounds = array<i64: 16, 32>}]} {
    %c0 = arith.constant 0 : index
    %c0_0 = arith.constant 0 : index
    %0 = vector.load %arg1[%c0, %c0_0] : memref<16x32xf32, #tpu.memory_space<vmem>>, vector<16x32xf32>
    %c0_1 = arith.constant 0 : index
    %c0_2 = arith.constant 0 : index
    %1 = vector.load %arg2[%c0_1, %c0_2] : memref<16x32xf32, #tpu.memory_space<vmem>>, vector<16x32xf32>
    %2 = arith.addf %0, %1 : vector<16x32xf32>
    %c0_3 = arith.constant 0 : index
    %c0_4 = arith.constant 0 : index
    %3 = vector.load %arg3[%c0_3, %c0_4] : memref<1x32xf32, #tpu.memory_space<vmem>>, vector<1x32xf32>
    %c0_5 = arith.constant 0 : index
    %c0_6 = arith.constant 0 : index
    %4 = vector.load %arg4[%c0_5, %c0_6] : memref<1x32xf32, #tpu.memory_space<vmem>>, vector<1x32xf32>
    %cst = arith.constant dense<0.000000e+00> : vector<16xf32>
    %5 = vector.multi_reduction <add>, %2, %cst [1] : vector<16x32xf32> to vector<16xf32>
    %6 = vector.shape_cast %5 : vector<16xf32> to vector<16x1xf32>
    %cst_7 = arith.constant 3.200000e+01 : f32
    %7 = vector.broadcast %cst_7 : f32 to vector<16x1xf32>
    %8 = arith.divf %6, %7 : vector<16x1xf32>
    %9 = vector.broadcast %8 : vector<16x1xf32> to vector<16x32xf32>
    %10 = arith.subf %2, %9 : vector<16x32xf32>
    %11 = arith.mulf %10, %10 : vector<16x32xf32>
    %cst_8 = arith.constant dense<0.000000e+00> : vector<16xf32>
    %12 = vector.multi_reduction <add>, %11, %cst_8 [1] : vector<16x32xf32> to vector<16xf32>
    %13 = vector.shape_cast %12 : vector<16xf32> to vector<16x1xf32>
    %cst_9 = arith.constant 3.200000e+01 : f32
    %14 = vector.broadcast %cst_9 : f32 to vector<16x1xf32>
    %15 = arith.divf %13, %14 : vector<16x1xf32>
    %cst_10 = arith.constant 9.99999974E-6 : f32
    %16 = vector.broadcast %cst_10 : f32 to vector<16x1xf32>
    %17 = arith.addf %15, %16 : vector<16x1xf32>
    %18 = math.rsqrt %17 : vector<16x1xf32>
    %19 = vector.broadcast %18 : vector<16x1xf32> to vector<16x32xf32>
    %20 = arith.mulf %10, %19 : vector<16x32xf32>
    %21 = vector.broadcast %3 : vector<1x32xf32> to vector<16x32xf32>
    %22 = arith.mulf %20, %21 : vector<16x32xf32>
    %23 = vector.broadcast %4 : vector<1x32xf32> to vector<16x32xf32>
    %24 = arith.addf %22, %23 : vector<16x32xf32>
    %c0_11 = arith.constant 0 : index
    %c0_12 = arith.constant 0 : index
    %25 = vector.load %arg5[%c0_11, %c0_12] : memref<16x32xf32, #tpu.memory_space<vmem>>, vector<16x32xf32>
    tpu.vector_store %arg5[%c0_11, %c0_12], %24 {strides = array<i32>} : memref<16x32xf32, #tpu.memory_space<vmem>>, vector<16x32xf32>,
    return
  }
  func.func @transform_0(%arg0: i32) -> (i32, i32) {
    %c0_i32 = arith.constant 0 : i32
    %c0_i32_0 = arith.constant 0 : i32
    return %arg0, %c0_i32 : i32, i32
  }
  func.func @transform_1(%arg0: i32) -> (i32, i32) {
    %c0_i32 = arith.constant 0 : i32
    %c0_i32_0 = arith.constant 0 : i32
    return %arg0, %c0_i32 : i32, i32
  }
  func.func @transform_2(%arg0: i32) -> (i32, i32) {
    %c0_i32 = arith.constant 0 : i32
    %c0_i32_0 = arith.constant 0 : i32
    %c0_i32_1 = arith.constant 0 : i32
    return %c0_i32, %c0_i32_0 : i32, i32
  }
  func.func @transform_3(%arg0: i32) -> (i32, i32) {
    %c0_i32 = arith.constant 0 : i32
    %c0_i32_0 = arith.constant 0 : i32
    %c0_i32_1 = arith.constant 0 : i32
    return %c0_i32, %c0_i32_0 : i32, i32
  }
  func.func @transform_4(%arg0: i32) -> (i32, i32) {
    %c0_i32 = arith.constant 0 : i32
    %c0_i32_0 = arith.constant 0 : i32
    return %arg0, %c0_i32 : i32, i32
  }
}

module attributes {stable_mosaic.version = 11 : i64} {
  func.func @head_hidden_kernel(%arg0: i32, %arg1: memref<16x32xf32, #tpu.memory_space<vmem>>, %arg2: memref<1x32xf32, #tpu.memory_space<vmem>>, %arg3: memref<1x32xf32, #tpu.memory_space<vmem>>, %arg4: memref<32x32xbf16, #tpu.memory_space<vmem>>, %arg5: memref<1x32xf32, #tpu.memory_space<vmem>>, %arg6: memref<1x32xf32, #tpu.memory_space<vmem>>, %arg7: memref<1x32xf32, #tpu.memory_space<vmem>>, %arg8: memref<16x32xbf16, #tpu.memory_space<vmem>>) attributes {dimension_semantics = [#tpu.dimension_semantics<parallel>], iteration_bounds = array<i64: 1>, scalar_prefetch = 0 : i64, scratch_operands = 0 : i64, tpu.core_type = #tpu.core_type<tc>, window_params = [{transform_indices = @transform_0, window_bounds = array<i64: 16, 32>}, {pipeline_mode = #tpu.pipeline_mode<synchronous>, transform_indices = @transform_1, window_bounds = array<i64: 1, 32>}, {pipeline_mode = #tpu.pipeline_mode<synchronous>, transform_indices = @transform_2, window_bounds = array<i64: 1, 32>}, {pipeline_mode = #tpu.pipeline_mode<synchronous>, transform_indices = @transform_3, window_bounds = array<i64: 32, 32>}, {pipeline_mode = #tpu.pipeline_mode<synchronous>, transform_indices = @transform_4, window_bounds = array<i64: 1, 32>}, {pipeline_mode = #tpu.pipeline_mode<synchronous>, transform_indices = @transform_5, window_bounds = array<i64: 1, 32>}, {pipeline_mode = #tpu.pipeline_mode<synchronous>, transform_indices = @transform_6, window_bounds = array<i64: 1, 32>}, {transform_indices = @transform_7, window_bounds = array<i64: 16, 32>}]} {
    %c0 = arith.constant 0 : index
    %c0_0 = arith.constant 0 : index
    %0 = vector.load %arg1[%c0, %c0_0] : memref<16x32xf32, #tpu.memory_space<vmem>>, vector<16x32xf32>
    %c0_1 = arith.constant 0 : index
    %c0_2 = arith.constant 0 : index
    %1 = vector.load %arg2[%c0_1, %c0_2] : memref<1x32xf32, #tpu.memory_space<vmem>>, vector<1x32xf32>
    %c0_3 = arith.constant 0 : index
    %c0_4 = arith.constant 0 : index
    %2 = vector.load %arg3[%c0_3, %c0_4] : memref<1x32xf32, #tpu.memory_space<vmem>>, vector<1x32xf32>
    %cst = arith.constant dense<0.000000e+00> : vector<16xf32>
    %3 = vector.multi_reduction <add>, %0, %cst [1] : vector<16x32xf32> to vector<16xf32>
    %4 = vector.shape_cast %3 : vector<16xf32> to vector<16x1xf32>
    %cst_5 = arith.constant 3.200000e+01 : f32
    %5 = vector.broadcast %cst_5 : f32 to vector<16x1xf32>
    %6 = arith.divf %4, %5 : vector<16x1xf32>
    %7 = vector.broadcast %6 : vector<16x1xf32> to vector<16x32xf32>
    %8 = arith.subf %0, %7 : vector<16x32xf32>
    %9 = arith.mulf %8, %8 : vector<16x32xf32>
    %cst_6 = arith.constant dense<0.000000e+00> : vector<16xf32>
    %10 = vector.multi_reduction <add>, %9, %cst_6 [1] : vector<16x32xf32> to vector<16xf32>
    %11 = vector.shape_cast %10 : vector<16xf32> to vector<16x1xf32>
    %cst_7 = arith.constant 3.200000e+01 : f32
    %12 = vector.broadcast %cst_7 : f32 to vector<16x1xf32>
    %13 = arith.divf %11, %12 : vector<16x1xf32>
    %cst_8 = arith.constant 9.99999974E-6 : f32
    %14 = vector.broadcast %cst_8 : f32 to vector<16x1xf32>
    %15 = arith.addf %13, %14 : vector<16x1xf32>
    %16 = math.rsqrt %15 : vector<16x1xf32>
    %17 = vector.broadcast %16 : vector<16x1xf32> to vector<16x32xf32>
    %18 = arith.mulf %8, %17 : vector<16x32xf32>
    %19 = vector.broadcast %1 : vector<1x32xf32> to vector<16x32xf32>
    %20 = arith.mulf %18, %19 : vector<16x32xf32>
    %21 = vector.broadcast %2 : vector<1x32xf32> to vector<16x32xf32>
    %22 = arith.addf %20, %21 : vector<16x32xf32>
    %23 = arith.truncf %22 : vector<16x32xf32> to vector<16x32xbf16>
    %c0_9 = arith.constant 0 : index
    %c0_10 = arith.constant 0 : index
    %24 = vector.load %arg4[%c0_9, %c0_10] : memref<32x32xbf16, #tpu.memory_space<vmem>>, vector<32x32xbf16>
    %cst_11 = arith.constant dense<0.000000e+00> : vector<16x32xf32>
    %25 = tpu.matmul %23, %24, %cst_11 {dimension_numbers = #tpu.dot_dimension_numbers<[1], [0], [0], [1], [0, 0, 1, 1], [], []>} : vector<16x32xbf16>, vector<32x32xbf16>, vector<16x32xf32> -> vector<16x32xf32>
    %c0_12 = arith.constant 0 : index
    %c0_13 = arith.constant 0 : index
    %26 = vector.load %arg5[%c0_12, %c0_13] : memref<1x32xf32, #tpu.memory_space<vmem>>, vector<1x32xf32>
    %27 = vector.broadcast %26 : vector<1x32xf32> to vector<16x32xf32>
    %28 = arith.addf %25, %27 : vector<16x32xf32>
    %cst_14 = arith.constant 5.000000e-01 : f32
    %29 = vector.broadcast %cst_14 : f32 to vector<16x32xf32>
    %30 = arith.mulf %29, %28 : vector<16x32xf32>
    %cst_15 = arith.constant 0.707106769 : f32
    %31 = vector.broadcast %cst_15 : f32 to vector<16x32xf32>
    %32 = arith.mulf %28, %31 : vector<16x32xf32>
    %33 = math.erf %32 : vector<16x32xf32>
    %cst_16 = arith.constant 1.000000e+00 : f32
    %34 = vector.broadcast %cst_16 : f32 to vector<16x32xf32>
    %35 = arith.addf %34, %33 : vector<16x32xf32>
    %36 = arith.mulf %30, %35 : vector<16x32xf32>
    %c0_17 = arith.constant 0 : index
    %c0_18 = arith.constant 0 : index
    %37 = vector.load %arg6[%c0_17, %c0_18] : memref<1x32xf32, #tpu.memory_space<vmem>>, vector<1x32xf32>
    %c0_19 = arith.constant 0 : index
    %c0_20 = arith.constant 0 : index
    %38 = vector.load %arg7[%c0_19, %c0_20] : memref<1x32xf32, #tpu.memory_space<vmem>>, vector<1x32xf32>
    %cst_21 = arith.constant dense<0.000000e+00> : vector<16xf32>
    %39 = vector.multi_reduction <add>, %36, %cst_21 [1] : vector<16x32xf32> to vector<16xf32>
    %40 = vector.shape_cast %39 : vector<16xf32> to vector<16x1xf32>
    %cst_22 = arith.constant 3.200000e+01 : f32
    %41 = vector.broadcast %cst_22 : f32 to vector<16x1xf32>
    %42 = arith.divf %40, %41 : vector<16x1xf32>
    %43 = vector.broadcast %42 : vector<16x1xf32> to vector<16x32xf32>
    %44 = arith.subf %36, %43 : vector<16x32xf32>
    %45 = arith.mulf %44, %44 : vector<16x32xf32>
    %cst_23 = arith.constant dense<0.000000e+00> : vector<16xf32>
    %46 = vector.multi_reduction <add>, %45, %cst_23 [1] : vector<16x32xf32> to vector<16xf32>
    %47 = vector.shape_cast %46 : vector<16xf32> to vector<16x1xf32>
    %cst_24 = arith.constant 3.200000e+01 : f32
    %48 = vector.broadcast %cst_24 : f32 to vector<16x1xf32>
    %49 = arith.divf %47, %48 : vector<16x1xf32>
    %cst_25 = arith.constant 9.99999974E-6 : f32
    %50 = vector.broadcast %cst_25 : f32 to vector<16x1xf32>
    %51 = arith.addf %49, %50 : vector<16x1xf32>
    %52 = math.rsqrt %51 : vector<16x1xf32>
    %53 = vector.broadcast %52 : vector<16x1xf32> to vector<16x32xf32>
    %54 = arith.mulf %44, %53 : vector<16x32xf32>
    %55 = vector.broadcast %37 : vector<1x32xf32> to vector<16x32xf32>
    %56 = arith.mulf %54, %55 : vector<16x32xf32>
    %57 = vector.broadcast %38 : vector<1x32xf32> to vector<16x32xf32>
    %58 = arith.addf %56, %57 : vector<16x32xf32>
    %59 = arith.truncf %58 : vector<16x32xf32> to vector<16x32xbf16>
    %c0_26 = arith.constant 0 : index
    %c0_27 = arith.constant 0 : index
    %60 = vector.load %arg8[%c0_26, %c0_27] : memref<16x32xbf16, #tpu.memory_space<vmem>>, vector<16x32xbf16>
    tpu.vector_store %arg8[%c0_26, %c0_27], %59 {strides = array<i32>} : memref<16x32xbf16, #tpu.memory_space<vmem>>, vector<16x32xbf16>,
    return
  }
  func.func @transform_0(%arg0: i32) -> (i32, i32) {
    %c0_i32 = arith.constant 0 : i32
    %c0_i32_0 = arith.constant 0 : i32
    return %arg0, %c0_i32 : i32, i32
  }
  func.func @transform_1(%arg0: i32) -> (i32, i32) {
    %c0_i32 = arith.constant 0 : i32
    %c0_i32_0 = arith.constant 0 : i32
    %c0_i32_1 = arith.constant 0 : i32
    return %c0_i32, %c0_i32_0 : i32, i32
  }
  func.func @transform_2(%arg0: i32) -> (i32, i32) {
    %c0_i32 = arith.constant 0 : i32
    %c0_i32_0 = arith.constant 0 : i32
    %c0_i32_1 = arith.constant 0 : i32
    return %c0_i32, %c0_i32_0 : i32, i32
  }
  func.func @transform_3(%arg0: i32) -> (i32, i32) {
    %c0_i32 = arith.constant 0 : i32
    %c0_i32_0 = arith.constant 0 : i32
    %c0_i32_1 = arith.constant 0 : i32
    return %c0_i32, %c0_i32_0 : i32, i32
  }
  func.func @transform_4(%arg0: i32) -> (i32, i32) {
    %c0_i32 = arith.constant 0 : i32
    %c0_i32_0 = arith.constant 0 : i32
    %c0_i32_1 = arith.constant 0 : i32
    return %c0_i32, %c0_i32_0 : i32, i32
  }
  func.func @transform_5(%arg0: i32) -> (i32, i32) {
    %c0_i32 = arith.constant 0 : i32
    %c0_i32_0 = arith.constant 0 : i32
    %c0_i32_1 = arith.constant 0 : i32
    return %c0_i32, %c0_i32_0 : i32, i32
  }
  func.func @transform_6(%arg0: i32) -> (i32, i32) {
    %c0_i32 = arith.constant 0 : i32
    %c0_i32_0 = arith.constant 0 : i32
    %c0_i32_1 = arith.constant 0 : i32
    return %c0_i32, %c0_i32_0 : i32, i32
  }
  func.func @transform_7(%arg0: i32) -> (i32, i32) {
    %c0_i32 = arith.constant 0 : i32
    %c0_i32_0 = arith.constant 0 : i32
    return %arg0, %c0_i32 : i32, i32
  }
}

module attributes {stable_mosaic.version = 11 : i64} {
  func.func @layers_kernel(%arg0: i32, %arg1: i32, %arg2: memref<16x32xf32, #tpu.memory_space<vmem>>, %arg3: memref<2x1x8xf32, #tpu.memory_space<vmem>>, %arg4: memref<1x32x96xbf16, #tpu.memory_space<vmem>>, %arg5: memref<1x1x96xf32, #tpu.memory_space<vmem>>, %arg6: memref<1x32x32xbf16, #tpu.memory_space<vmem>>, %arg7: memref<1x1x32xf32, #tpu.memory_space<vmem>>, %arg8: memref<1x1x32xf32, #tpu.memory_space<vmem>>, %arg9: memref<1x1x32xf32, #tpu.memory_space<vmem>>, %arg10: memref<1x32x128xbf16, #tpu.memory_space<vmem>>, %arg11: memref<1x1x128xf32, #tpu.memory_space<vmem>>, %arg12: memref<1x128x32xbf16, #tpu.memory_space<vmem>>, %arg13: memref<1x1x32xf32, #tpu.memory_space<vmem>>, %arg14: memref<1x1x32xf32, #tpu.memory_space<vmem>>, %arg15: memref<1x1x32xf32, #tpu.memory_space<vmem>>, %arg16: memref<16x32xf32, #tpu.memory_space<vmem>>) attributes {dimension_semantics = [#tpu.dimension_semantics<parallel>, #tpu.dimension_semantics<arbitrary>], iteration_bounds = array<i64: 1, 2>, scalar_prefetch = 0 : i64, scratch_operands = 0 : i64, tpu.core_type = #tpu.core_type<tc>, window_params = [{transform_indices = @transform_0, window_bounds = array<i64: 16, 32>}, {transform_indices = @transform_1, window_bounds = array<i64: 2, 1, 8>}, {transform_indices = @transform_2, window_bounds = array<i64: 1, 32, 96>}, {transform_indices = @transform_3, window_bounds = array<i64: 1, 1, 96>}, {transform_indices = @transform_4, window_bounds = array<i64: 1, 32, 32>}, {transform_indices = @transform_5, window_bounds = array<i64: 1, 1, 32>}, {transform_indices = @transform_6, window_bounds = array<i64: 1, 1, 32>}, {transform_indices = @transform_7, window_bounds = array<i64: 1, 1, 32>}, {transform_indices = @transform_8, window_bounds = array<i64: 1, 32, 128>}, {transform_indices = @transform_9, window_bounds = array<i64: 1, 1, 128>}, {transform_indices = @transform_10, window_bounds = array<i64: 1, 128, 32>}, {transform_indices = @transform_11, window_bounds = array<i64: 1, 1, 32>}, {transform_indices = @transform_12, window_bounds = array<i64: 1, 1, 32>}, {transform_indices = @transform_13, window_bounds = array<i64: 1, 1, 32>}, {transform_indices = @transform_14, window_bounds = array<i64: 16, 32>}]} {
    %c0_i32 = arith.constant 0 : i32
    %0 = arith.cmpi eq, %arg1, %c0_i32 : i32
    %1 = arith.extui %0 : i1 to i32
    %c0_i32_0 = arith.constant 0 : i32
    %2 = arith.cmpi ne, %1, %c0_i32_0 : i32
    scf.if %2 {
      %c0_64 = arith.constant 0 : index
      %c0_65 = arith.constant 0 : index
      %138 = vector.load %arg2[%c0_64, %c0_65] : memref<16x32xf32, #tpu.memory_space<vmem>>, vector<16x32xf32>
      %c0_66 = arith.constant 0 : index
      %c0_67 = arith.constant 0 : index
      %139 = vector.load %arg16[%c0_66, %c0_67] : memref<16x32xf32, #tpu.memory_space<vmem>>, vector<16x32xf32>
      tpu.vector_store %arg16[%c0_66, %c0_67], %138 {strides = array<i32>} : memref<16x32xf32, #tpu.memory_space<vmem>>, vector<16x32xf32>,
    } else {
    }
    %c0 = arith.constant 0 : index
    %c0_1 = arith.constant 0 : index
    %3 = vector.load %arg16[%c0, %c0_1] : memref<16x32xf32, #tpu.memory_space<vmem>>, vector<16x32xf32>
    %4 = arith.truncf %3 : vector<16x32xf32> to vector<16x32xbf16>
    %c0_2 = arith.constant 0 : index
    %c0_3 = arith.constant 0 : index
    %c0_4 = arith.constant 0 : index
    %5 = vector.load %arg4[%c0_2, %c0_3, %c0_4] : memref<1x32x96xbf16, #tpu.memory_space<vmem>>, vector<1x32x96xbf16>
    %6 = vector.shape_cast %5 : vector<1x32x96xbf16> to vector<32x96xbf16>
    %cst = arith.constant dense<0.000000e+00> : vector<16x96xf32>
    %7 = tpu.matmul %4, %6, %cst {dimension_numbers = #tpu.dot_dimension_numbers<[1], [0], [0], [1], [0, 0, 1, 1], [], []>} : vector<16x32xbf16>, vector<32x96xbf16>, vector<16x96xf32> -> vector<16x96xf32>
    %c0_5 = arith.constant 0 : index
    %c0_6 = arith.constant 0 : index
    %c0_7 = arith.constant 0 : index
    %8 = vector.load %arg5[%c0_5, %c0_6, %c0_7] : memref<1x1x96xf32, #tpu.memory_space<vmem>>, vector<1x1x96xf32>
    %9 = vector.shape_cast %8 : vector<1x1x96xf32> to vector<1x96xf32>
    %10 = vector.broadcast %9 : vector<1x96xf32> to vector<16x96xf32>
    %11 = arith.addf %7, %10 : vector<16x96xf32>
    %12 = arith.truncf %11 : vector<16x96xf32> to vector<16x96xbf16>
    %13 = vector.extract_strided_slice %12 {offsets = [0, 0], sizes = [16, 16], strides = [1, 1]} : vector<16x96xbf16> to vector<16x16xbf16>
    %14 = vector.shape_cast %13 : vector<16x16xbf16> to vector<2x8x16xbf16>
    %15 = vector.extract_strided_slice %12 {offsets = [0, 16], sizes = [16, 16], strides = [1, 1]} : vector<16x96xbf16> to vector<16x16xbf16>
    %16 = vector.shape_cast %15 : vector<16x16xbf16> to vector<2x8x16xbf16>
    %17 = tpu.concatenate %14, %16 in 0 : vector<2x8x16xbf16>, vector<2x8x16xbf16> -> vector<4x8x16xbf16>
    %18 = vector.extract_strided_slice %12 {offsets = [0, 32], sizes = [16, 16], strides = [1, 1]} : vector<16x96xbf16> to vector<16x16xbf16>
    %19 = vector.shape_cast %18 : vector<16x16xbf16> to vector<2x8x16xbf16>
    %20 = vector.extract_strided_slice %12 {offsets = [0, 48], sizes = [16, 16], strides = [1, 1]} : vector<16x96xbf16> to vector<16x16xbf16>
    %21 = vector.shape_cast %20 : vector<16x16xbf16> to vector<2x8x16xbf16>
    %22 = tpu.concatenate %19, %21 in 0 : vector<2x8x16xbf16>, vector<2x8x16xbf16> -> vector<4x8x16xbf16>
    %23 = vector.extract_strided_slice %12 {offsets = [0, 64], sizes = [16, 16], strides = [1, 1]} : vector<16x96xbf16> to vector<16x16xbf16>
    %24 = vector.shape_cast %23 : vector<16x16xbf16> to vector<2x8x16xbf16>
    %25 = vector.extract_strided_slice %12 {offsets = [0, 80], sizes = [16, 16], strides = [1, 1]} : vector<16x96xbf16> to vector<16x16xbf16>
    %26 = vector.shape_cast %25 : vector<16x16xbf16> to vector<2x8x16xbf16>
    %27 = tpu.concatenate %24, %26 in 0 : vector<2x8x16xbf16>, vector<2x8x16xbf16> -> vector<4x8x16xbf16>
    %c0_8 = arith.constant 0 : index
    %c0_9 = arith.constant 0 : index
    %c0_10 = arith.constant 0 : index
    %28 = vector.load %arg3[%c0_8, %c0_9, %c0_10] : memref<2x1x8xf32, #tpu.memory_space<vmem>>, vector<2x1x8xf32>
    %29 = vector.shape_cast %28 : vector<2x1x8xf32> to vector<1x2x1x8xf32>
    %30 = vector.shape_cast %29 : vector<1x2x1x8xf32> to vector<1x2x1x8xf32>
    %31 = vector.broadcast %30 : vector<1x2x1x8xf32> to vector<2x2x1x8xf32>
    %32 = vector.shape_cast %31 : vector<2x2x1x8xf32> to vector<4x1x8xf32>
    "tpu.trace_start"() <{level = 10 : i32, message = "gqd,gkd->gqk"}> : () -> ()
    %cst_11 = arith.constant dense<0.000000e+00> : vector<4x8x8xf32>
    %33 = tpu.matmul %17, %22, %cst_11 {dimension_numbers = #tpu.dot_dimension_numbers<[2], [2], [1], [1], [0, 0, 0, 1, 1, 1], [0], [0]>} : vector<4x8x16xbf16>, vector<4x8x16xbf16>, vector<4x8x8xf32> -> vector<4x8x8xf32>
    "tpu.trace_stop"() : () -> ()
    %cst_12 = arith.constant 2.500000e-01 : f32
    %34 = vector.broadcast %cst_12 : f32 to vector<4x8x8xf32>
    %35 = arith.mulf %33, %34 : vector<4x8x8xf32>
    %36 = vector.broadcast %32 : vector<4x1x8xf32> to vector<4x8x8xf32>
    %37 = arith.addf %35, %36 : vector<4x8x8xf32>
    %cst_13 = arith.constant dense<0xFF800000> : vector<4x8xf32>
    %38 = vector.multi_reduction <maximumf>, %37, %cst_13 [2] : vector<4x8x8xf32> to vector<4x8xf32>
    %39 = vector.shape_cast %38 : vector<4x8xf32> to vector<4x8x1xf32>
    %40 = vector.broadcast %39 : vector<4x8x1xf32> to vector<4x8x8xf32>
    %41 = arith.subf %37, %40 : vector<4x8x8xf32>
    %42 = math.exp %41 : vector<4x8x8xf32>
    %cst_14 = arith.constant dense<0.000000e+00> : vector<4x8xf32>
    %43 = vector.multi_reduction <add>, %42, %cst_14 [2] : vector<4x8x8xf32> to vector<4x8xf32>
    %44 = vector.shape_cast %43 : vector<4x8xf32> to vector<4x8x1xf32>
    %45 = tpu.reciprocal %44 {approx = true} : vector<4x8x1xf32> -> vector<4x8x1xf32>
    %46 = vector.broadcast %45 : vector<4x8x1xf32> to vector<4x8x8xf32>
    %47 = arith.mulf %42, %46 : vector<4x8x8xf32>
    %48 = arith.truncf %47 : vector<4x8x8xf32> to vector<4x8x8xbf16>
    "tpu.trace_start"() <{level = 10 : i32, message = "gqk,gkd->gqd"}> : () -> ()
    %cst_15 = arith.constant dense<0.000000e+00> : vector<4x8x16xf32>
    %49 = tpu.matmul %48, %27, %cst_15 {dimension_numbers = #tpu.dot_dimension_numbers<[2], [1], [1], [2], [0, 0, 0, 1, 1, 2], [0], [0]>} : vector<4x8x8xbf16>, vector<4x8x16xbf16>, vector<4x8x16xf32> -> vector<4x8x16xf32>
    "tpu.trace_stop"() : () -> ()
    %50 = vector.extract_strided_slice %49 {offsets = [0, 0, 0], sizes = [2, 8, 16], strides = [1, 1, 1]} : vector<4x8x16xf32> to vector<2x8x16xf32>
    %51 = vector.shape_cast %50 : vector<2x8x16xf32> to vector<16x16xf32>
    %52 = vector.extract_strided_slice %49 {offsets = [2, 0, 0], sizes = [2, 8, 16], strides = [1, 1, 1]} : vector<4x8x16xf32> to vector<2x8x16xf32>
    %53 = vector.shape_cast %52 : vector<2x8x16xf32> to vector<16x16xf32>
    %54 = tpu.concatenate %51, %53 in 1 : vector<16x16xf32>, vector<16x16xf32> -> vector<16x32xf32>
    %55 = arith.truncf %54 : vector<16x32xf32> to vector<16x32xbf16>
    %c0_16 = arith.constant 0 : index
    %c0_17 = arith.constant 0 : index
    %c0_18 = arith.constant 0 : index
    %56 = vector.load %arg6[%c0_16, %c0_17, %c0_18] : memref<1x32x32xbf16, #tpu.memory_space<vmem>>, vector<1x32x32xbf16>
    %57 = vector.shape_cast %56 : vector<1x32x32xbf16> to vector<32x32xbf16>
    %cst_19 = arith.constant dense<0.000000e+00> : vector<16x32xf32>
    %58 = tpu.matmul %55, %57, %cst_19 {dimension_numbers = #tpu.dot_dimension_numbers<[1], [0], [0], [1], [0, 0, 1, 1], [], []>} : vector<16x32xbf16>, vector<32x32xbf16>, vector<16x32xf32> -> vector<16x32xf32>
    %c0_20 = arith.constant 0 : index
    %c0_21 = arith.constant 0 : index
    %c0_22 = arith.constant 0 : index
    %59 = vector.load %arg7[%c0_20, %c0_21, %c0_22] : memref<1x1x32xf32, #tpu.memory_space<vmem>>, vector<1x1x32xf32>
    %60 = vector.shape_cast %59 : vector<1x1x32xf32> to vector<1x32xf32>
    %61 = vector.broadcast %60 : vector<1x32xf32> to vector<16x32xf32>
    %62 = arith.addf %58, %61 : vector<16x32xf32>
    %63 = arith.addf %3, %62 : vector<16x32xf32>
    %c0_23 = arith.constant 0 : index
    %c0_24 = arith.constant 0 : index
    %c0_25 = arith.constant 0 : index
    %64 = vector.load %arg8[%c0_23, %c0_24, %c0_25] : memref<1x1x32xf32, #tpu.memory_space<vmem>>, vector<1x1x32xf32>
    %65 = vector.shape_cast %64 : vector<1x1x32xf32> to vector<1x32xf32>
    %c0_26 = arith.constant 0 : index
    %c0_27 = arith.constant 0 : index
    %c0_28 = arith.constant 0 : index
    %66 = vector.load %arg9[%c0_26, %c0_27, %c0_28] : memref<1x1x32xf32, #tpu.memory_space<vmem>>, vector<1x1x32xf32>
    %67 = vector.shape_cast %66 : vector<1x1x32xf32> to vector<1x32xf32>
    %cst_29 = arith.constant dense<0.000000e+00> : vector<16xf32>
    %68 = vector.multi_reduction <add>, %63, %cst_29 [1] : vector<16x32xf32> to vector<16xf32>
    %69 = vector.shape_cast %68 : vector<16xf32> to vector<16x1xf32>
    %cst_30 = arith.constant 3.200000e+01 : f32
    %70 = vector.broadcast %cst_30 : f32 to vector<16x1xf32>
    %71 = arith.divf %69, %70 : vector<16x1xf32>
    %72 = vector.broadcast %71 : vector<16x1xf32> to vector<16x32xf32>
    %73 = arith.subf %63, %72 : vector<16x32xf32>
    %74 = arith.mulf %73, %73 : vector<16x32xf32>
    %cst_31 = arith.constant dense<0.000000e+00> : vector<16xf32>
    %75 = vector.multi_reduction <add>, %74, %cst_31 [1] : vector<16x32xf32> to vector<16xf32>
    %76 = vector.shape_cast %75 : vector<16xf32> to vector<16x1xf32>
    %cst_32 = arith.constant 3.200000e+01 : f32
    %77 = vector.broadcast %cst_32 : f32 to vector<16x1xf32>
    %78 = arith.divf %76, %77 : vector<16x1xf32>
    %cst_33 = arith.constant 9.99999974E-6 : f32
    %79 = vector.broadcast %cst_33 : f32 to vector<16x1xf32>
    %80 = arith.addf %78, %79 : vector<16x1xf32>
    %81 = math.rsqrt %80 : vector<16x1xf32>
    %82 = vector.broadcast %81 : vector<16x1xf32> to vector<16x32xf32>
    %83 = arith.mulf %73, %82 : vector<16x32xf32>
    %84 = vector.broadcast %65 : vector<1x32xf32> to vector<16x32xf32>
    %85 = arith.mulf %83, %84 : vector<16x32xf32>
    %86 = vector.broadcast %67 : vector<1x32xf32> to vector<16x32xf32>
    %87 = arith.addf %85, %86 : vector<16x32xf32>
    %88 = arith.truncf %87 : vector<16x32xf32> to vector<16x32xbf16>
    %c0_34 = arith.constant 0 : index
    %c0_35 = arith.constant 0 : index
    %c0_36 = arith.constant 0 : index
    %89 = vector.load %arg10[%c0_34, %c0_35, %c0_36] : memref<1x32x128xbf16, #tpu.memory_space<vmem>>, vector<1x32x128xbf16>
    %90 = vector.shape_cast %89 : vector<1x32x128xbf16> to vector<32x128xbf16>
    %cst_37 = arith.constant dense<0.000000e+00> : vector<16x128xf32>
    %91 = tpu.matmul %88, %90, %cst_37 {dimension_numbers = #tpu.dot_dimension_numbers<[1], [0], [0], [1], [0, 0, 1, 1], [], []>} : vector<16x32xbf16>, vector<32x128xbf16>, vector<16x128xf32> -> vector<16x128xf32>
    %c0_38 = arith.constant 0 : index
    %c0_39 = arith.constant 0 : index
    %c0_40 = arith.constant 0 : index
    %92 = vector.load %arg11[%c0_38, %c0_39, %c0_40] : memref<1x1x128xf32, #tpu.memory_space<vmem>>, vector<1x1x128xf32>
    %93 = vector.shape_cast %92 : vector<1x1x128xf32> to vector<1x128xf32>
    %94 = vector.broadcast %93 : vector<1x128xf32> to vector<16x128xf32>
    %95 = arith.addf %91, %94 : vector<16x128xf32>
    %cst_41 = arith.constant 5.000000e-01 : f32
    %96 = vector.broadcast %cst_41 : f32 to vector<16x128xf32>
    %97 = arith.mulf %96, %95 : vector<16x128xf32>
    %cst_42 = arith.constant 0.707106769 : f32
    %98 = vector.broadcast %cst_42 : f32 to vector<16x128xf32>
    %99 = arith.mulf %95, %98 : vector<16x128xf32>
    %100 = math.erf %99 : vector<16x128xf32>
    %cst_43 = arith.constant 1.000000e+00 : f32
    %101 = vector.broadcast %cst_43 : f32 to vector<16x128xf32>
    %102 = arith.addf %101, %100 : vector<16x128xf32>
    %103 = arith.mulf %97, %102 : vector<16x128xf32>
    %104 = arith.truncf %103 : vector<16x128xf32> to vector<16x128xbf16>
    %c0_44 = arith.constant 0 : index
    %c0_45 = arith.constant 0 : index
    %c0_46 = arith.constant 0 : index
    %105 = vector.load %arg12[%c0_44, %c0_45, %c0_46] : memref<1x128x32xbf16, #tpu.memory_space<vmem>>, vector<1x128x32xbf16>
    %106 = vector.shape_cast %105 : vector<1x128x32xbf16> to vector<128x32xbf16>
    %cst_47 = arith.constant dense<0.000000e+00> : vector<16x32xf32>
    %107 = tpu.matmul %104, %106, %cst_47 {dimension_numbers = #tpu.dot_dimension_numbers<[1], [0], [0], [1], [0, 0, 1, 1], [], []>} : vector<16x128xbf16>, vector<128x32xbf16>, vector<16x32xf32> -> vector<16x32xf32>
    %c0_48 = arith.constant 0 : index
    %c0_49 = arith.constant 0 : index
    %c0_50 = arith.constant 0 : index
    %108 = vector.load %arg13[%c0_48, %c0_49, %c0_50] : memref<1x1x32xf32, #tpu.memory_space<vmem>>, vector<1x1x32xf32>
    %109 = vector.shape_cast %108 : vector<1x1x32xf32> to vector<1x32xf32>
    %110 = vector.broadcast %109 : vector<1x32xf32> to vector<16x32xf32>
    %111 = arith.addf %107, %110 : vector<16x32xf32>
    %112 = arith.addf %87, %111 : vector<16x32xf32>
    %c0_51 = arith.constant 0 : index
    %c0_52 = arith.constant 0 : index
    %c0_53 = arith.constant 0 : index
    %113 = vector.load %arg14[%c0_51, %c0_52, %c0_53] : memref<1x1x32xf32, #tpu.memory_space<vmem>>, vector<1x1x32xf32>
    %114 = vector.shape_cast %113 : vector<1x1x32xf32> to vector<1x32xf32>
    %c0_54 = arith.constant 0 : index
    %c0_55 = arith.constant 0 : index
    %c0_56 = arith.constant 0 : index
    %115 = vector.load %arg15[%c0_54, %c0_55, %c0_56] : memref<1x1x32xf32, #tpu.memory_space<vmem>>, vector<1x1x32xf32>
    %116 = vector.shape_cast %115 : vector<1x1x32xf32> to vector<1x32xf32>
    %cst_57 = arith.constant dense<0.000000e+00> : vector<16xf32>
    %117 = vector.multi_reduction <add>, %112, %cst_57 [1] : vector<16x32xf32> to vector<16xf32>
    %118 = vector.shape_cast %117 : vector<16xf32> to vector<16x1xf32>
    %cst_58 = arith.constant 3.200000e+01 : f32
    %119 = vector.broadcast %cst_58 : f32 to vector<16x1xf32>
    %120 = arith.divf %118, %119 : vector<16x1xf32>
    %121 = vector.broadcast %120 : vector<16x1xf32> to vector<16x32xf32>
    %122 = arith.subf %112, %121 : vector<16x32xf32>
    %123 = arith.mulf %122, %122 : vector<16x32xf32>
    %cst_59 = arith.constant dense<0.000000e+00> : vector<16xf32>
    %124 = vector.multi_reduction <add>, %123, %cst_59 [1] : vector<16x32xf32> to vector<16xf32>
    %125 = vector.shape_cast %124 : vector<16xf32> to vector<16x1xf32>
    %cst_60 = arith.constant 3.200000e+01 : f32
    %126 = vector.broadcast %cst_60 : f32 to vector<16x1xf32>
    %127 = arith.divf %125, %126 : vector<16x1xf32>
    %cst_61 = arith.constant 9.99999974E-6 : f32
    %128 = vector.broadcast %cst_61 : f32 to vector<16x1xf32>
    %129 = arith.addf %127, %128 : vector<16x1xf32>
    %130 = math.rsqrt %129 : vector<16x1xf32>
    %131 = vector.broadcast %130 : vector<16x1xf32> to vector<16x32xf32>
    %132 = arith.mulf %122, %131 : vector<16x32xf32>
    %133 = vector.broadcast %114 : vector<1x32xf32> to vector<16x32xf32>
    %134 = arith.mulf %132, %133 : vector<16x32xf32>
    %135 = vector.broadcast %116 : vector<1x32xf32> to vector<16x32xf32>
    %136 = arith.addf %134, %135 : vector<16x32xf32>
    %c0_62 = arith.constant 0 : index
    %c0_63 = arith.constant 0 : index
    %137 = vector.load %arg16[%c0_62, %c0_63] : memref<16x32xf32, #tpu.memory_space<vmem>>, vector<16x32xf32>
    tpu.vector_store %arg16[%c0_62, %c0_63], %136 {strides = array<i32>} : memref<16x32xf32, #tpu.memory_space<vmem>>, vector<16x32xf32>,
    return
  }
  func.func @transform_0(%arg0: i32, %arg1: i32) -> (i32, i32) {
    %c0_i32 = arith.constant 0 : i32
    %c0_i32_0 = arith.constant 0 : i32
    return %arg0, %c0_i32 : i32, i32
  }
  func.func @transform_1(%arg0: i32, %arg1: i32) -> (i32, i32, i32) {
    %c0_i32 = arith.constant 0 : i32
    %c0_i32_0 = arith.constant 0 : i32
    %c0_i32_1 = arith.constant 0 : i32
    return %arg0, %c0_i32, %c0_i32_0 : i32, i32, i32
  }
  func.func @transform_2(%arg0: i32, %arg1: i32) -> (i32, i32, i32) {
    %c0_i32 = arith.constant 0 : i32
    %c0_i32_0 = arith.constant 0 : i32
    %c0_i32_1 = arith.constant 0 : i32
    return %arg1, %c0_i32, %c0_i32_0 : i32, i32, i32
  }
  func.func @transform_3(%arg0: i32, %arg1: i32) -> (i32, i32, i32) {
    %c0_i32 = arith.constant 0 : i32
    %c0_i32_0 = arith.constant 0 : i32
    %c0_i32_1 = arith.constant 0 : i32
    return %arg1, %c0_i32, %c0_i32_0 : i32, i32, i32
  }
  func.func @transform_4(%arg0: i32, %arg1: i32) -> (i32, i32, i32) {
    %c0_i32 = arith.constant 0 : i32
    %c0_i32_0 = arith.constant 0 : i32
    %c0_i32_1 = arith.constant 0 : i32
    return %arg1, %c0_i32, %c0_i32_0 : i32, i32, i32
  }
  func.func @transform_5(%arg0: i32, %arg1: i32) -> (i32, i32, i32) {
    %c0_i32 = arith.constant 0 : i32
    %c0_i32_0 = arith.constant 0 : i32
    %c0_i32_1 = arith.constant 0 : i32
    return %arg1, %c0_i32, %c0_i32_0 : i32, i32, i32
  }
  func.func @transform_6(%arg0: i32, %arg1: i32) -> (i32, i32, i32) {
    %c0_i32 = arith.constant 0 : i32
    %c0_i32_0 = arith.constant 0 : i32
    %c0_i32_1 = arith.constant 0 : i32
    return %arg1, %c0_i32, %c0_i32_0 : i32, i32, i32
  }
  func.func @transform_7(%arg0: i32, %arg1: i32) -> (i32, i32, i32) {
    %c0_i32 = arith.constant 0 : i32
    %c0_i32_0 = arith.constant 0 : i32
    %c0_i32_1 = arith.constant 0 : i32
    return %arg1, %c0_i32, %c0_i32_0 : i32, i32, i32
  }
  func.func @transform_8(%arg0: i32, %arg1: i32) -> (i32, i32, i32) {
    %c0_i32 = arith.constant 0 : i32
    %c0_i32_0 = arith.constant 0 : i32
    %c0_i32_1 = arith.constant 0 : i32
    return %arg1, %c0_i32, %c0_i32_0 : i32, i32, i32
  }
  func.func @transform_9(%arg0: i32, %arg1: i32) -> (i32, i32, i32) {
    %c0_i32 = arith.constant 0 : i32
    %c0_i32_0 = arith.constant 0 : i32
    %c0_i32_1 = arith.constant 0 : i32
    return %arg1, %c0_i32, %c0_i32_0 : i32, i32, i32
  }
  func.func @transform_10(%arg0: i32, %arg1: i32) -> (i32, i32, i32) {
    %c0_i32 = arith.constant 0 : i32
    %c0_i32_0 = arith.constant 0 : i32
    %c0_i32_1 = arith.constant 0 : i32
    return %arg1, %c0_i32, %c0_i32_0 : i32, i32, i32
  }
  func.func @transform_11(%arg0: i32, %arg1: i32) -> (i32, i32, i32) {
    %c0_i32 = arith.constant 0 : i32
    %c0_i32_0 = arith.constant 0 : i32
    %c0_i32_1 = arith.constant 0 : i32
    return %arg1, %c0_i32, %c0_i32_0 : i32, i32, i32
  }
  func.func @transform_12(%arg0: i32, %arg1: i32) -> (i32, i32, i32) {
    %c0_i32 = arith.constant 0 : i32
    %c0_i32_0 = arith.constant 0 : i32
    %c0_i32_1 = arith.constant 0 : i32
    return %arg1, %c0_i32, %c0_i32_0 : i32, i32, i32
  }
  func.func @transform_13(%arg0: i32, %arg1: i32) -> (i32, i32, i32) {
    %c0_i32 = arith.constant 0 : i32
    %c0_i32_0 = arith.constant 0 : i32
    %c0_i32_1 = arith.constant 0 : i32
    return %arg1, %c0_i32, %c0_i32_0 : i32, i32, i32
  }
  func.func @transform_14(%arg0: i32, %arg1: i32) -> (i32, i32) {
    %c0_i32 = arith.constant 0 : i32
    %c0_i32_0 = arith.constant 0 : i32
    return %arg0, %c0_i32 : i32, i32
  }
}

module attributes {stable_mosaic.version = 11 : i64} {
  func.func @logits_kernel(%arg0: i32, %arg1: i32, %arg2: memref<16x32xbf16, #tpu.memory_space<vmem>>, %arg3: memref<32x128xbf16, #tpu.memory_space<vmem>>, %arg4: memref<1x128xf32, #tpu.memory_space<vmem>>, %arg5: memref<16x128xf32, #tpu.memory_space<vmem>>) attributes {dimension_semantics = [#tpu.dimension_semantics<parallel>, #tpu.dimension_semantics<parallel>], iteration_bounds = array<i64: 1, 1>, scalar_prefetch = 0 : i64, scratch_operands = 0 : i64, tpu.core_type = #tpu.core_type<tc>, window_params = [{transform_indices = @transform_0, window_bounds = array<i64: 16, 32>}, {transform_indices = @transform_1, window_bounds = array<i64: 32, 128>}, {transform_indices = @transform_2, window_bounds = array<i64: 1, 128>}, {transform_indices = @transform_3, window_bounds = array<i64: 16, 128>}]} {
    %c0 = arith.constant 0 : index
    %c0_0 = arith.constant 0 : index
    %0 = vector.load %arg2[%c0, %c0_0] : memref<16x32xbf16, #tpu.memory_space<vmem>>, vector<16x32xbf16>
    %c0_1 = arith.constant 0 : index
    %c0_2 = arith.constant 0 : index
    %1 = vector.load %arg3[%c0_1, %c0_2] : memref<32x128xbf16, #tpu.memory_space<vmem>>, vector<32x128xbf16>
    %cst = arith.constant dense<0.000000e+00> : vector<16x128xf32>
    %2 = tpu.matmul %0, %1, %cst {dimension_numbers = #tpu.dot_dimension_numbers<[1], [0], [0], [1], [0, 0, 1, 1], [], []>} : vector<16x32xbf16>, vector<32x128xbf16>, vector<16x128xf32> -> vector<16x128xf32>
    %c0_3 = arith.constant 0 : index
    %c0_4 = arith.constant 0 : index
    %3 = vector.load %arg4[%c0_3, %c0_4] : memref<1x128xf32, #tpu.memory_space<vmem>>, vector<1x128xf32>
    %4 = vector.broadcast %3 : vector<1x128xf32> to vector<16x128xf32>
    %5 = arith.addf %2, %4 : vector<16x128xf32>
    %c0_5 = arith.constant 0 : index
    %c0_6 = arith.constant 0 : index
    %6 = vector.load %arg5[%c0_5, %c0_6] : memref<16x128xf32, #tpu.memory_space<vmem>>, vector<16x128xf32>
    tpu.vector_store %arg5[%c0_5, %c0_6], %5 {strides = array<i32>} : memref<16x128xf32, #tpu.memory_space<vmem>>, vector<16x128xf32>,
    return
  }
  func.func @transform_0(%arg0: i32, %arg1: i32) -> (i32, i32) {
    %c0_i32 = arith.constant 0 : i32
    %c0_i32_0 = arith.constant 0 : i32
    return %arg0, %c0_i32 : i32, i32
  }
  func.func @transform_1(%arg0: i32, %arg1: i32) -> (i32, i32) {
    %c0_i32 = arith.constant 0 : i32
    %c0_i32_0 = arith.constant 0 : i32
    return %c0_i32, %arg1 : i32, i32
  }
  func.func @transform_2(%arg0: i32, %arg1: i32) -> (i32, i32) {
    %c0_i32 = arith.constant 0 : i32
    %c0_i32_0 = arith.constant 0 : i32
    return %c0_i32, %arg1 : i32, i32
  }
  func.func @transform_3(%arg0: i32, %arg1: i32) -> (i32, i32) {
    %c0_i32 = arith.constant 0 : i32
    return %arg0, %arg1 : i32, i32
  }
}

</mosaic_0001>

<llo_original>
// kernel: bert4rec_forward.4
$region0: #{bert4rec_forward.4}
  #allocation0 [shape = 'u32[]', space=smem, size = 0x4, offset = 0x4, fixed_abs, tag = 'smem constant byte address 0x4 - core index']
  #allocation1 [shape = 'u32[144,128]{1,0:T(1,128)}', space=vmem, size = 0x12000, scoped, tag = 'internal scratch']
  %s0 = inlined_call_operand.vmem [shape: f32[16,32], index: 0, kind: input, shape index: {}]
  %s1 = inlined_call_operand.vmem [shape: f32[16,32], index: 1, kind: input, shape index: {}]
  %s2 = inlined_call_operand.vmem [shape: f32[1,32], index: 2, kind: input, shape index: {}]
  %s3 = inlined_call_operand.vmem [shape: f32[1,32], index: 3, kind: input, shape index: {}]
  %s4 = inlined_call_operand.vmem [shape: f32[16,32], index: 4, kind: output, shape index: {}]
  %s5 = sld [smem:[#allocation0]]
  $region26: #{bert4rec_forward.4} parent=0
    _
  %s7 = ssub.s32 1, %s5
  %s8 = scalar_select 0, %s7, %s5
  // Predicated region
  $region2: #{bert4rec_forward.4} parent=0 // pred_check
    _
  $region3: #{bert4rec_forward.4} parent=0 // pred_check_branch
    %10 = sbr.rel (0) target = $region5
  $region4: #{bert4rec_forward.4} parent=0 // pred_region
    _
  $region5: #{bert4rec_forward.4} parent=0 // pred_fallthru
    _
  // Predicated region
  $region6: #{bert4rec_forward.4} parent=0 // pred_check
    _
  $region7: #{bert4rec_forward.4} parent=0 // pred_check_branch
    %12 = sbr.rel (0) target = $region9
  $region8: #{bert4rec_forward.4} parent=0 // pred_region
    _
  $region9: #{bert4rec_forward.4} parent=0 // pred_fallthru
    _
  // Predicated region
  $region10: #{bert4rec_forward.4} parent=0 // pred_check
    _
  $region11: #{bert4rec_forward.4} parent=0 // pred_check_branch
    %14 = sbr.rel (0) target = $region13
  $region12: #{bert4rec_forward.4} parent=0 // pred_region
    _
  $region13: #{bert4rec_forward.4} parent=0 // pred_fallthru
    _
  // Predicated region
  $region14: #{bert4rec_forward.4} parent=0 // pred_check
    _
  $region15: #{bert4rec_forward.4} parent=0 // pred_check_branch
    %16 = sbr.rel (0) target = $region17
  $region16: #{bert4rec_forward.4} parent=0 // pred_region
    _
  $region17: #{bert4rec_forward.4} parent=0 // pred_fallthru
    _
  %v17 = vld [vmem:[%s0] sm:$0xff]
  %v18 = vld [vmem:[%s0 + $0x8] sm:$0xff]
  %v19 = vld [vmem:[%s1] sm:$0xff]
  %v20 = vld [vmem:[%s1 + $0x8] sm:$0xff]
  %v21 = vadd.f32 %v17, %v19
  %v22 = vadd.f32 %v18, %v20
  %v23 = vld [vmem:[%s2] sm:$0x1]
  %v24 = vld [vmem:[%s3] sm:$0x1]
  %vm25 = vcmask 261120
  %v26 = vsel %vm25, %v21, 0.0
  %27 = vadd.xlane.f32.xlu0 %v26
  %v28 = vpop.xlane.xlu0 %27
  %v29 = vsel %vm25, %v22, 0.0
  %30 = vadd.xlane.f32.xlu0 %v29
  %v31 = vpop.xlane.xlu0 %30
  %v32 = vrcp.pop 32.0
  %v33 = vmul.f32 %v28, %v32
  %v34 = vmul.f32 %v31, %v32
  %v35 = vsub.f32 %v21, %v33
  %v36 = vsub.f32 %v22, %v34
  %v37 = vmul.f32 %v35, %v35
  %v38 = vmul.f32 %v36, %v36
  %v39 = vsel %vm25, %v37, 0.0
  %40 = vadd.xlane.f32.xlu0 %v39
  %v41 = vpop.xlane.xlu0 %40
  %v42 = vsel %vm25, %v38, 0.0
  %43 = vadd.xlane.f32.xlu0 %v42
  %v44 = vpop.xlane.xlu0 %43
  %v45 = vmul.f32 %v41, %v32
  %v46 = vmul.f32 %v44, %v32
  %v47 = vadd.f32 %v45, 1e-05
  %v48 = vadd.f32 %v46, 1e-05
  %v49 = vrsqrt.pop %v47
  %v50 = vrsqrt.pop %v48
  %v51 = vmul.f32 %v35, %v49
  %v52 = vmul.f32 %v36, %v50
  %v54 = vlaneseq
  %v55 = vshrl.u32 %v54, 7
  %v56 = vsub.s32 0, %v55
  %v57 = vrot.slane %v23, %v56
  %v59 = vmul.f32 %v51, %v57
  %v60 = vmul.f32 %v52, %v57
  %v62 = vlaneseq
  %v63 = vshrl.u32 %v62, 7
  %v64 = vsub.s32 0, %v63
  %v65 = vrot.slane %v24, %v64
  %v67 = vadd.f32 %v59, %v65
  %v68 = vadd.f32 %v60, %v65
  %69 = vst.msk [vmem:[%s4] sm:$0xff] %vm25, %v67
  %70 = vst.msk [vmem:[%s4 + $0x8] sm:$0xff] %vm25, %v68
  // Predicated region
  $region18: #{bert4rec_forward.4} parent=0 // pred_check
    _
  $region19: #{bert4rec_forward.4} parent=0 // pred_check_branch
    %72 = sbr.rel (0) target = $region21
  $region20: #{bert4rec_forward.4} parent=0 // pred_region
    _
  $region21: #{bert4rec_forward.4} parent=0 // pred_fallthru
    _
  // Predicated region
  $region22: #{bert4rec_forward.4} parent=0 // pred_check
    _
  $region23: #{bert4rec_forward.4} parent=0 // pred_check_branch
    %74 = sbr.rel (0) target = $region25
  $region24: #{bert4rec_forward.4} parent=0 // pred_region
    _
  $region25: #{bert4rec_forward.4} parent=0 // pred_fallthru
    _

// kernel: bert4rec_forward.7
$region0: #{bert4rec_forward.7}
  #allocation0 [shape = 'u32[]', space=smem, size = 0x4, offset = 0x4, fixed_abs, tag = 'smem constant byte address 0x4 - core index']
  #allocation1 [shape = 'u32[144,128]{1,0:T(1,128)}', space=vmem, size = 0x12000, scoped, tag = 'internal scratch']
  %s0 = inlined_call_operand.vmem [shape: bf16[16,32], index: 0, kind: input, shape index: {}]
  %s1 = inlined_call_operand.vmem [shape: bf16[32,128], index: 1, kind: input, shape index: {}]
  %s2 = inlined_call_operand.vmem [shape: f32[1,128], index: 2, kind: input, shape index: {}]
  %s3 = inlined_call_operand.hbm [shape: f32[16,128], index: 3, kind: output, shape index: {}]
  %s4 = sld [smem:[#allocation0]]
  $region22: #{bert4rec_forward.7} parent=0
    _
  %s6 = ssub.s32 1, %s4
  %s7 = scalar_select 0, %s6, %s4
  $region1: #{bert4rec_forward.7} parent=0
    #allocation2 [shape = 'u8[8192]{0}', space=vmem, size = 0x2000, scoped, tag = 'output window, operand 0, single buffered']
    #allocation3 [shape = 's32[1]{0}', space=sflag, size = 0x4, scoped, tag = 'scoped memory for bert4rec_forward.7']
    %8 = vsyncpa [#allocation3], 0
    // Predicated region
    $region2: #{bert4rec_forward.7} parent=1 // pred_check
      _
    $region3: #{bert4rec_forward.7} parent=1 // pred_check_branch
      %10 = sbr.rel (0) target = $region5
    $region4: #{bert4rec_forward.7} parent=1 // pred_region
      _
    $region5: #{bert4rec_forward.7} parent=1 // pred_fallthru
      _
    // Predicated region
    $region6: #{bert4rec_forward.7} parent=1 // pred_check
      _
    $region7: #{bert4rec_forward.7} parent=1 // pred_check_branch
      %12 = sbr.rel (0) target = $region9
    $region8: #{bert4rec_forward.7} parent=1 // pred_region
      _
    $region9: #{bert4rec_forward.7} parent=1 // pred_fallthru
      _
    // Predicated region
    $region10: #{bert4rec_forward.7} parent=1 // pred_check
      _
    $region11: #{bert4rec_forward.7} parent=1 // pred_check_branch
      %14 = sbr.rel (0) target = $region13
    $region12: #{bert4rec_forward.7} parent=1 // pred_region
      _
    $region13: #{bert4rec_forward.7} parent=1 // pred_fallthru
      _
    %v16 = vld [vmem:[%s0] sm:$0xf]
    %v17 = vld [vmem:[%s0 + $0x4] sm:$0xf]
    %v18 = vld [vmem:[%s1] sm:$0xf]
    %v19 = vld [vmem:[%s1 + $0x4] sm:$0xf]
    %v20 = vld [vmem:[%s1 + $0x8] sm:$0xf]
    %v21 = vld [vmem:[%s1 + $0xc] sm:$0xf]
    %v22 = vld [vmem:[%s2] sm:$0x1]
    %v24 = vlaneseq
    %v25 = vshrl.u32 %v24, 7
    %v26 = vsub.s32 0, %v25
    %v27 = vrot.slane %v22, %v26
    %v31 = vunpack.c.l.b16 %v16
    %v32 = vunpack.c.l.b16 %v17
    %v33 = vpack.c.b16 %v32, %v31
    %v38 = vunpack.c.l.b16 %v18
    %v39 = vunpack.c.l.b16 %v19
    %v40 = vunpack.c.l.b16 %v20
    %v41 = vunpack.c.l.b16 %v21
    %v42 = vpack.c.b16 %v39, %v38
    %v43 = vpack.c.b16 %v41, %v40
    %vm46 = vcmask 261120
    %v48 = vsel %vm46, %v33, 0
    %50 = vmatprep.subr.bf16.mxu0 0
    %51 = vmatpush1.bf16.msra.mxu0 %v42
    %52 = vmatprep.subr.bf16.mxu0 0
    %53 = vmatpush1.bf16.msra.mxu0 %v43
    %54 = vmatprep.subr.bf16.mxu0 0
    %55 = vmatpush1.bf16.msra.mxu0 0
    %56 = vmatprep.subr.bf16.mxu0 0
    %57 = vmatpush1.bf16.msra.mxu0 0
    %58 = vmatprep.subr.bf16.mxu0 0
    %59 = vmatpush1.bf16.msra.mxu0 0
    %60 = vmatprep.subr.bf16.mxu0 0
    %61 = vmatpush1.bf16.msra.mxu0 0
    %62 = vmatprep.subr.bf16.mxu0 0
    %63 = vmatpush1.bf16.msra.mxu0 0
    %64 = vmatprep.subr.bf16.mxu0 0
    %65 = vmatpush1.bf16.msra.mxu0 0
    %66 = vmatprep.subr.bf16.mxu0 0
    %67 = vmatpush1.bf16.msra.mxu0 0
    %68 = vmatprep.subr.bf16.mxu0 0
    %69 = vmatpush1.bf16.msra.mxu0 0
    %70 = vmatprep.subr.bf16.mxu0 0
    %71 = vmatpush1.bf16.msra.mxu0 0
    %72 = vmatprep.subr.bf16.mxu0 0
    %73 = vmatpush1.bf16.msra.mxu0 0
    %74 = vmatprep.subr.bf16.mxu0 0
    %75 = vmatpush1.bf16.msra.mxu0 0
    %76 = vmatprep.subr.bf16.mxu0 0
    %77 = vmatpush1.bf16.msra.mxu0 0
    %78 = vmatprep.subr.bf16.mxu0 0
    %79 = vmatpush1.bf16.msra.mxu0 0
    %80 = vmatprep.subr.bf16.mxu0 0
    %81 = vmatpush1.bf16.msra.mxu0 0
    %82 = vmatprep.mubr.bf16.mxu0 0
    %83 = vmatmul.mubr.bf16.gmra.mrb[0].mxu0 %v48
    %v84 = vpop.f32.mrb[0].mxu0
    %v85 = vadd.f32 %v27, %v84
    %v86 = vpop.f32.mrb[0].mxu0
    %v87 = vpop.f32.mrb[0].mxu0
    %v88 = vadd.f32 %v27, %v87
    %v89 = vpop.f32.mrb[0].mxu0
    %90 = vdwg.mxu0
    %91 = vst [vmem:[#allocation2] sm:$0xff] %v85
    %92 = vst [vmem:[#allocation2 + $0x8] sm:$0xff] %v88
    // Predicated region
    $region14: #{bert4rec_forward.7} parent=1 // pred_check
      _
    $region15: #{bert4rec_forward.7} parent=1 // pred_check_branch
      %94 = sbr.rel (0) target = $region17
    $region16: #{bert4rec_forward.7} parent=1 // pred_region
      %s96 = ssub.s32 256, 256
      %97 = vsyncadd [#allocation3], %s96
      %s98 = sshll.u32 [#allocation2], 4
      %s99 = int_to_ptr.vmem [resolvable:$true] %s98
      %104 = dma.vmem_to_hbm [thread:$0]  %s99, 256, %s3, [#allocation3], 128, 128, 8
    $region17: #{bert4rec_forward.7} parent=1 // pred_fallthru
      _
    // Predicated region
    $region18: #{bert4rec_forward.7} parent=1 // pred_check
      _
    $region19: #{bert4rec_forward.7} parent=1 // pred_check_branch
      %106 = sbr.rel (0) target = $region21
    $region20: #{bert4rec_forward.7} parent=1 // pred_region
      %107 = dma.done [#allocation3], 256
    $region21: #{bert4rec_forward.7} parent=1 // pred_fallthru
      _
    %108 = vsyncpa [#allocation3], 1

// kernel: bert4rec_forward.6
$region0: #{bert4rec_forward.6}
  #allocation0 [shape = 'u32[]', space=smem, size = 0x4, offset = 0x4, fixed_abs, tag = 'smem constant byte address 0x4 - core index']
  #allocation1 [shape = 'u32[144,128]{1,0:T(1,128)}', space=vmem, size = 0x12000, scoped, tag = 'internal scratch']
  %s0 = inlined_call_operand.vmem [shape: f32[16,32], index: 0, kind: input, shape index: {}]
  %s1 = inlined_call_operand.vmem [shape: f32[1,32], index: 1, kind: input, shape index: {}]
  %s2 = inlined_call_operand.vmem [shape: f32[1,32], index: 2, kind: input, shape index: {}]
  %s3 = inlined_call_operand.vmem [shape: bf16[32,32], index: 3, kind: input, shape index: {}]
  %s4 = inlined_call_operand.vmem [shape: f32[1,32], index: 4, kind: input, shape index: {}]
  %s5 = inlined_call_operand.vmem [shape: f32[1,32], index: 5, kind: input, shape index: {}]
  %s6 = inlined_call_operand.vmem [shape: f32[1,32], index: 6, kind: input, shape index: {}]
  %s7 = inlined_call_operand.vmem [shape: bf16[16,32], index: 7, kind: output, shape index: {}]
  %s8 = sld [smem:[#allocation0]]
  $region38: #{bert4rec_forward.6} parent=0
    _
  %s10 = ssub.s32 1, %s8
  %s11 = scalar_select 0, %s10, %s8
  // Predicated region
  $region2: #{bert4rec_forward.6} parent=0 // pred_check
    _
  $region3: #{bert4rec_forward.6} parent=0 // pred_check_branch
    %13 = sbr.rel (0) target = $region5
  $region4: #{bert4rec_forward.6} parent=0 // pred_region
    _
  $region5: #{bert4rec_forward.6} parent=0 // pred_fallthru
    _
  // Predicated region
  $region6: #{bert4rec_forward.6} parent=0 // pred_check
    _
  $region7: #{bert4rec_forward.6} parent=0 // pred_check_branch
    %15 = sbr.rel (0) target = $region9
  $region8: #{bert4rec_forward.6} parent=0 // pred_region
    _
  $region9: #{bert4rec_forward.6} parent=0 // pred_fallthru
    _
  // Predicated region
  $region10: #{bert4rec_forward.6} parent=0 // pred_check
    _
  $region11: #{bert4rec_forward.6} parent=0 // pred_check_branch
    %17 = sbr.rel (0) target = $region13
  $region12: #{bert4rec_forward.6} parent=0 // pred_region
    _
  $region13: #{bert4rec_forward.6} parent=0 // pred_fallthru
    _
  // Predicated region
  $region14: #{bert4rec_forward.6} parent=0 // pred_check
    _
  $region15: #{bert4rec_forward.6} parent=0 // pred_check_branch
    %19 = sbr.rel (0) target = $region17
  $region16: #{bert4rec_forward.6} parent=0 // pred_region
    _
  $region17: #{bert4rec_forward.6} parent=0 // pred_fallthru
    _
  // Predicated region
  $region18: #{bert4rec_forward.6} parent=0 // pred_check
    _
  $region19: #{bert4rec_forward.6} parent=0 // pred_check_branch
    %21 = sbr.rel (0) target = $region21
  $region20: #{bert4rec_forward.6} parent=0 // pred_region
    _
  $region21: #{bert4rec_forward.6} parent=0 // pred_fallthru
    _
  // Predicated region
  $region22: #{bert4rec_forward.6} parent=0 // pred_check
    _
  $region23: #{bert4rec_forward.6} parent=0 // pred_check_branch
    %23 = sbr.rel (0) target = $region25
  $region24: #{bert4rec_forward.6} parent=0 // pred_region
    _
  $region25: #{bert4rec_forward.6} parent=0 // pred_fallthru
    _
  // Predicated region
  $region26: #{bert4rec_forward.6} parent=0 // pred_check
    _
  $region27: #{bert4rec_forward.6} parent=0 // pred_check_branch
    %25 = sbr.rel (0) target = $region29
  $region28: #{bert4rec_forward.6} parent=0 // pred_region
    _
  $region29: #{bert4rec_forward.6} parent=0 // pred_fallthru
    _
  %v27 = vld [vmem:[%s0] sm:$0xff]
  %v28 = vld [vmem:[%s0 + $0x8] sm:$0xff]
  %v29 = vld [vmem:[%s1] sm:$0x1]
  %v30 = vld [vmem:[%s2] sm:$0x1]
  %vm31 = vcmask 261120
  %v32 = vsel %vm31, %v27, 0.0
  %33 = vadd.xlane.f32.xlu0 %v32
  %v34 = vpop.xlane.xlu0 %33
  %v35 = vsel %vm31, %v28, 0.0
  %36 = vadd.xlane.f32.xlu0 %v35
  %v37 = vpop.xlane.xlu0 %36
  %v38 = vrcp.pop 32.0
  %v39 = vmul.f32 %v34, %v38
  %v40 = vmul.f32 %v37, %v38
  %v41 = vsub.f32 %v27, %v39
  %v42 = vsub.f32 %v28, %v40
  %v43 = vmul.f32 %v41, %v41
  %v44 = vmul.f32 %v42, %v42
  %v45 = vsel %vm31, %v43, 0.0
  %46 = vadd.xlane.f32.xlu0 %v45
  %v47 = vpop.xlane.xlu0 %46
  %v48 = vsel %vm31, %v44, 0.0
  %49 = vadd.xlane.f32.xlu0 %v48
  %v50 = vpop.xlane.xlu0 %49
  %v51 = vmul.f32 %v47, %v38
  %v52 = vmul.f32 %v50, %v38
  %v53 = vadd.f32 %v51, 1e-05
  %v54 = vadd.f32 %v52, 1e-05
  %v55 = vrsqrt.pop %v53
  %v56 = vrsqrt.pop %v54
  %v57 = vmul.f32 %v41, %v55
  %v58 = vmul.f32 %v42, %v56
  %v60 = vlaneseq
  %v61 = vshrl.u32 %v60, 7
  %v62 = vsub.s32 0, %v61
  %v63 = vrot.slane %v29, %v62
  %v65 = vmul.f32 %v57, %v63
  %v66 = vmul.f32 %v58, %v63
  %v68 = vlaneseq
  %v69 = vshrl.u32 %v68, 7
  %v70 = vsub.s32 0, %v69
  %v71 = vrot.slane %v30, %v70
  %v73 = vadd.f32 %v65, %v71
  %v74 = vadd.f32 %v66, %v71
  %v75 = vpack.c.bf16 %v74, %v73
  %v76 = vld [vmem:[%s3] sm:$0xf]
  %v77 = vld [vmem:[%s3 + $0x4] sm:$0xf]
  %v78 = vld [vmem:[%s3 + $0x8] sm:$0xf]
  %v79 = vld [vmem:[%s3 + $0xc] sm:$0xf]
  %v80 = vld [vmem:[%s4] sm:$0x1]
  %v82 = vlaneseq
  %v83 = vshrl.u32 %v82, 7
  %v84 = vsub.s32 0, %v83
  %v85 = vrot.slane %v80, %v84
  %v91 = vunpack.c.l.b16 %v76
  %v92 = vunpack.c.l.b16 %v77
  %v93 = vunpack.c.l.b16 %v78
  %v94 = vunpack.c.l.b16 %v79
  %v95 = vpack.c.b16 %v92, %v91
  %v96 = vpack.c.b16 %v94, %v93
  %v100 = vsel %vm31, %v75, 0
  %102 = vmatprep.subr.bf16.mxu0 0
  %103 = vmatpush1.bf16.msra.mxu0 %v95
  %104 = vmatprep.subr.bf16.mxu0 0
  %105 = vmatpush1.bf16.msra.mxu0 %v96
  %106 = vmatprep.subr.bf16.mxu0 0
  %107 = vmatpush1.bf16.msra.mxu0 0
  %108 = vmatprep.subr.bf16.mxu0 0
  %109 = vmatpush1.bf16.msra.mxu0 0
  %110 = vmatprep.subr.bf16.mxu0 0
  %111 = vmatpush1.bf16.msra.mxu0 0
  %112 = vmatprep.subr.bf16.mxu0 0
  %113 = vmatpush1.bf16.msra.mxu0 0
  %114 = vmatprep.subr.bf16.mxu0 0
  %115 = vmatpush1.bf16.msra.mxu0 0
  %116 = vmatprep.subr.bf16.mxu0 0
  %117 = vmatpush1.bf16.msra.mxu0 0
  %118 = vmatprep.subr.bf16.mxu0 0
  %119 = vmatpush1.bf16.msra.mxu0 0
  %120 = vmatprep.subr.bf16.mxu0 0
  %121 = vmatpush1.bf16.msra.mxu0 0
  %122 = vmatprep.subr.bf16.mxu0 0
  %123 = vmatpush1.bf16.msra.mxu0 0
  %124 = vmatprep.subr.bf16.mxu0 0
  %125 = vmatpush1.bf16.msra.mxu0 0
  %126 = vmatprep.subr.bf16.mxu0 0
  %127 = vmatpush1.bf16.msra.mxu0 0
  %128 = vmatprep.subr.bf16.mxu0 0
  %129 = vmatpush1.bf16.msra.mxu0 0
  %130 = vmatprep.subr.bf16.mxu0 0
  %131 = vmatpush1.bf16.msra.mxu0 0
  %132 = vmatprep.subr.bf16.mxu0 0
  %133 = vmatpush1.bf16.msra.mxu0 0
  %134 = vmatprep.mubr.bf16.mxu0 0
  %135 = vmatmul.mubr.bf16.gmra.mrb[0].mxu0 %v100
  %v136 = vpop.f32.mrb[0].mxu0
  %v137 = vadd.f32 %v85, %v136
  %v138 = vpop.f32.mrb[0].mxu0
  %v139 = vpop.f32.mrb[0].mxu0
  %v140 = vadd.f32 %v85, %v139
  %v141 = vpop.f32.mrb[0].mxu0
  %142 = vdwg.mxu0
  %v143 = vmul.f32 %v137, 0.5
  %v144 = vmul.f32 %v140, 0.5
  %v145 = vmul.f32 %v137, 0.70710677
  %v146 = vmul.f32 %v140, 0.70710677
  %v147 = verf.f32.pop %v145
  %v148 = verf.f32.pop %v146
  %v149 = vadd.f32 %v147, 1.0
  %v150 = vadd.f32 %v148, 1.0
  %v151 = vmul.f32 %v143, %v149
  %v152 = vmul.f32 %v144, %v150
  %v153 = vld [vmem:[%s5] sm:$0x1]
  %v154 = vld [vmem:[%s6] sm:$0x1]
  %v155 = vsel %vm31, %v151, 0.0
  %156 = vadd.xlane.f32.xlu0 %v155
  %v157 = vpop.xlane.xlu0 %156
  %v158 = vsel %vm31, %v152, 0.0
  %159 = vadd.xlane.f32.xlu0 %v158
  %v160 = vpop.xlane.xlu0 %159
  %v161 = vmul.f32 %v157, %v38
  %v162 = vmul.f32 %v160, %v38
  %v163 = vsub.f32 %v151, %v161
  %v164 = vsub.f32 %v152, %v162
  %v165 = vmul.f32 %v163, %v163
  %v166 = vmul.f32 %v164, %v164
  %v167 = vsel %vm31, %v165, 0.0
  %168 = vadd.xlane.f32.xlu0 %v167
  %v169 = vpop.xlane.xlu0 %168
  %v170 = vsel %vm31, %v166, 0.0
  %171 = vadd.xlane.f32.xlu0 %v170
  %v172 = vpop.xlane.xlu0 %171
  %v173 = vmul.f32 %v169, %v38
  %v174 = vmul.f32 %v172, %v38
  %v175 = vadd.f32 %v173, 1e-05
  %v176 = vadd.f32 %v174, 1e-05
  %v177 = vrsqrt.pop %v175
  %v178 = vrsqrt.pop %v176
  %v179 = vmul.f32 %v163, %v177
  %v180 = vmul.f32 %v164, %v178
  %v182 = vlaneseq
  %v183 = vshrl.u32 %v182, 7
  %v184 = vsub.s32 0, %v183
  %v185 = vrot.slane %v153, %v184
  %v187 = vmul.f32 %v179, %v185
  %v188 = vmul.f32 %v180, %v185
  %v190 = vlaneseq
  %v191 = vshrl.u32 %v190, 7
  %v192 = vsub.s32 0, %v191
  %v193 = vrot.slane %v154, %v192
  %v195 = vadd.f32 %v187, %v193
  %v196 = vadd.f32 %v188, %v193
  %v197 = vpack.c.bf16 %v196, %v195
  %v199 = vunpack.c.l.b16 %v197
  %v200 = vunpack.c.h.b16 %v197
  %v201 = vpack.c.b16 %v199, %v199
  %v202 = vpack.c.b16 %v200, %v200
  %vm205 = vcmask 257024
  %206 = vst.msk [vmem:[%s7] sm:$0xf] %vm205, %v201
  %207 = vst.msk [vmem:[%s7 + $0x4] sm:$0xf] %vm205, %v202
  // Predicated region
  $region30: #{bert4rec_forward.6} parent=0 // pred_check
    _
  $region31: #{bert4rec_forward.6} parent=0 // pred_check_branch
    %209 = sbr.rel (0) target = $region33
  $region32: #{bert4rec_forward.6} parent=0 // pred_region
    _
  $region33: #{bert4rec_forward.6} parent=0 // pred_fallthru
    _
  // Predicated region
  $region34: #{bert4rec_forward.6} parent=0 // pred_check
    _
  $region35: #{bert4rec_forward.6} parent=0 // pred_check_branch
    %211 = sbr.rel (0) target = $region37
  $region36: #{bert4rec_forward.6} parent=0 // pred_region
    _
  $region37: #{bert4rec_forward.6} parent=0 // pred_fallthru
    _

// kernel: bert4rec_forward.5
$region0: #{bert4rec_forward.5}
  #allocation0 [shape = 'u32[]', space=smem, size = 0x4, offset = 0x4, fixed_abs, tag = 'smem constant byte address 0x4 - core index']
  #allocation1 [shape = 'u32[144,128]{1,0:T(1,128)}', space=vmem, size = 0x12000, scoped, tag = 'internal scratch']
  %s0 = inlined_call_operand.vmem [shape: f32[16,32], index: 0, kind: input, shape index: {}]
  %s1 = inlined_call_operand.vmem [shape: f32[2,1,8], index: 1, kind: input, shape index: {}]
  %s2 = inlined_call_operand.vmem [shape: bf16[2,32,96], index: 2, kind: input, shape index: {}]
  %s3 = inlined_call_operand.vmem [shape: f32[2,1,96], index: 3, kind: input, shape index: {}]
  %s4 = inlined_call_operand.vmem [shape: bf16[2,32,32], index: 4, kind: input, shape index: {}]
  %s5 = inlined_call_operand.vmem [shape: f32[2,1,32], index: 5, kind: input, shape index: {}]
  %s6 = inlined_call_operand.vmem [shape: f32[2,1,32], index: 6, kind: input, shape index: {}]
  %s7 = inlined_call_operand.vmem [shape: f32[2,1,32], index: 7, kind: input, shape index: {}]
  %s8 = inlined_call_operand.vmem [shape: bf16[2,32,128], index: 8, kind: input, shape index: {}]
  %s9 = inlined_call_operand.vmem [shape: f32[2,1,128], index: 9, kind: input, shape index: {}]
  %s10 = inlined_call_operand.vmem [shape: bf16[2,128,32], index: 10, kind: input, shape index: {}]
  %s11 = inlined_call_operand.vmem [shape: f32[2,1,32], index: 11, kind: input, shape index: {}]
  %s12 = inlined_call_operand.vmem [shape: f32[2,1,32], index: 12, kind: input, shape index: {}]
  %s13 = inlined_call_operand.vmem [shape: f32[2,1,32], index: 13, kind: input, shape index: {}]
  %s14 = inlined_call_operand.vmem [shape: f32[16,32], index: 14, kind: output, shape index: {}]
  %s15 = sld [smem:[#allocation0]]
  $region93: #{bert4rec_forward.5} parent=0
    _
  %s17 = ssub.s32 1, %s15
  %s18 = scalar_select 0, %s17, %s15
  loop: start=0, step=1, limit=4
  $region2: #{bert4rec_forward.5} parent=0 // loop_pre_header
    _
  $region3: #{bert4rec_forward.5} parent=0 // loop_header
    %s20 = sphi 0, %s24
    %p21 = scmp.ge.s32.totalorder %s20, 4
    %s27 = sphi 0, %s39
    %s28 = sphi 0, %s35
    %s29 = sphi 0, %s27
    %s30 = sphi 0, %s28
    %s31 = sphi 0, %s29
    %s32 = sphi 0, %s30
    %s42 = sphi 0, %s44
    %s45 = sphi 0, %s42
    %s46 = sphi 0, %s45
    %s62 = sphi 0, %s46
    %s68 = sphi 0, %s70
    %s71 = sphi 0, %s68
    %s72 = sphi 0, %s71
    %s88 = sphi 0, %s72
    %s94 = sphi 0, %s96
    %s97 = sphi 0, %s94
    %s98 = sphi 0, %s97
    %s114 = sphi 0, %s98
    %s120 = sphi 0, %s122
    %s123 = sphi 0, %s120
    %s124 = sphi 0, %s123
    %s140 = sphi 0, %s124
    %s146 = sphi 0, %s148
    %s149 = sphi 0, %s146
    %s150 = sphi 0, %s149
    %s166 = sphi 0, %s150
    %s172 = sphi 0, %s174
    %s175 = sphi 0, %s172
    %s176 = sphi 0, %s175
    %s192 = sphi 0, %s176
    %s198 = sphi 0, %s200
    %s201 = sphi 0, %s198
    %s202 = sphi 0, %s201
    %s218 = sphi 0, %s202
    %s224 = sphi 0, %s226
    %s227 = sphi 0, %s224
    %s228 = sphi 0, %s227
    %s244 = sphi 0, %s228
    %s250 = sphi 0, %s252
    %s253 = sphi 0, %s250
    %s254 = sphi 0, %s253
    %s270 = sphi 0, %s254
    %s276 = sphi 0, %s278
    %s279 = sphi 0, %s276
    %s280 = sphi 0, %s279
    %s296 = sphi 0, %s280
    %s302 = sphi 0, %s304
    %s305 = sphi 0, %s302
    %s306 = sphi 0, %s305
    %s322 = sphi 0, %s306
    %s328 = sphi 0, %s330
    %s331 = sphi 0, %s328
    %s332 = sphi 0, %s331
    %s348 = sphi 0, %s332
    %s354 = sphi 0, %s356
    %s357 = sphi 0, %s354
    %s358 = sphi 0, %s357
    %s374 = sphi 0, %s358
    %s380 = sphi 0, %s382
    %s383 = sphi 0, %s380
    %s384 = sphi 0, %s383
    %s400 = sphi 0, %s384
    %s406 = sphi 0, %s408
    %s409 = sphi 0, %s406
    %s410 = sphi 0, %s409
    %s426 = sphi 0, %s410
  $region4: #{bert4rec_forward.5} parent=0 // loop_header_branch
    %23 = sbr.rel (%p21) target = $region8
  $region5: #{bert4rec_forward.5} parent=0 // loop_body
    %s25 = ssub.s32 %s20, 1
    %s26 = ssub.s32 %s20, 2
    %s33 = sadd.s32 1, %s28
    %p34 = scmp.ge.s32.totalorder %s33, 2
    %s35 = scalar_select %p34, 0, %s33
    %s36 = sadd.s32 1, %s27
    %s37 = scalar_select %p34, %s36, %s27
    %p38 = scmp.ge.s32.totalorder %s37, 1
    %s39 = scalar_select %p38, 0, %s37
    %s40 = ssub.s32 %s27, %s39
    %p41 = scmp.eq.s32.totalorder %s40, 0
    %s43 = sadd.s32 %s42, 1
    %s44 = scalar_select %p41, %s42, %s43
    %p47 = pneg %p41
    %p48 = scmp.eq.s32.totalorder %s20, 1
    %p49 = por %p47, %p48
    %p50 = scmp.ne.s32.totalorder %s42, %s45
    %p51 = scmp.eq.s32.totalorder %s20, 0
    %p52 = por %p50, %p51
    %p53 = scmp.ne.s32.totalorder %s42, %s45
    %p54 = scmp.eq.s32.totalorder %s25, 1
    %p55 = por %p53, %p54
    %p56 = scmp.ne.s32.totalorder %s45, %s46
    %p57 = scmp.eq.s32.totalorder %s25, 0
    %p58 = por %p56, %p57
    %p59 = scmp.ne.s32.totalorder %s45, %s46
    %p60 = scmp.eq.s32.totalorder %s26, 1
    %p61 = por %p59, %p60
    %p63 = scmp.ne.s32.totalorder %s46, %s62
    %p64 = scmp.eq.s32.totalorder %s26, 0
    %p65 = por %p63, %p64
    %s66 = ssub.s32 %s27, %s39
    %p67 = scmp.eq.s32.totalorder %s66, 0
    %s69 = sadd.s32 %s68, 1
    %s70 = scalar_select %p67, %s68, %s69
    %p73 = pneg %p67
    %p74 = scmp.eq.s32.totalorder %s20, 1
    %p75 = por %p73, %p74
    %p76 = scmp.ne.s32.totalorder %s68, %s71
    %p77 = scmp.eq.s32.totalorder %s20, 0
    %p78 = por %p76, %p77
    %p79 = scmp.ne.s32.totalorder %s68, %s71
    %p80 = scmp.eq.s32.totalorder %s25, 1
    %p81 = por %p79, %p80
    %p82 = scmp.ne.s32.totalorder %s71, %s72
    %p83 = scmp.eq.s32.totalorder %s25, 0
    %p84 = por %p82, %p83
    %p85 = scmp.ne.s32.totalorder %s71, %s72
    %p86 = scmp.eq.s32.totalorder %s26, 1
    %p87 = por %p85, %p86
    %p89 = scmp.ne.s32.totalorder %s72, %s88
    %p90 = scmp.eq.s32.totalorder %s26, 0
    %p91 = por %p89, %p90
    %s92 = ssub.s32 %s28, %s35
    %p93 = scmp.eq.s32.totalorder %s92, 0
    %s95 = sadd.s32 %s94, 1
    %s96 = scalar_select %p93, %s94, %s95
    %p99 = pneg %p93
    %p100 = scmp.eq.s32.totalorder %s20, 1
    %p101 = por %p99, %p100
    %p102 = scmp.ne.s32.totalorder %s94, %s97
    %p103 = scmp.eq.s32.totalorder %s20, 0
    %p104 = por %p102, %p103
    %p105 = scmp.ne.s32.totalorder %s94, %s97
    %p106 = scmp.eq.s32.totalorder %s25, 1
    %p107 = por %p105, %p106
    %p108 = scmp.ne.s32.totalorder %s97, %s98
    %p109 = scmp.eq.s32.totalorder %s25, 0
    %p110 = por %p108, %p109
    %p111 = scmp.ne.s32.totalorder %s97, %s98
    %p112 = scmp.eq.s32.totalorder %s26, 1
    %p113 = por %p111, %p112
    %p115 = scmp.ne.s32.totalorder %s98, %s114
    %p116 = scmp.eq.s32.totalorder %s26, 0
    %p117 = por %p115, %p116
    %s118 = ssub.s32 %s28, %s35
    %p119 = scmp.eq.s32.totalorder %s118, 0
    %s121 = sadd.s32 %s120, 1
    %s122 = scalar_select %p119, %s120, %s121
    %p125 = pneg %p119
    %p126 = scmp.eq.s32.totalorder %s20, 1
    %p127 = por %p125, %p126
    %p128 = scmp.ne.s32.totalorder %s120, %s123
    %p129 = scmp.eq.s32.totalorder %s20, 0
    %p130 = por %p128, %p129
    %p131 = scmp.ne.s32.totalorder %s120, %s123
    %p132 = scmp.eq.s32.totalorder %s25, 1
    %p133 = por %p131, %p132
    %p134 = scmp.ne.s32.totalorder %s123, %s124
    %p135 = scmp.eq.s32.totalorder %s25, 0
    %p136 = por %p134, %p135
    %p137 = scmp.ne.s32.totalorder %s123, %s124
    %p138 = scmp.eq.s32.totalorder %s26, 1
    %p139 = por %p137, %p138
    %p141 = scmp.ne.s32.totalorder %s124, %s140
    %p142 = scmp.eq.s32.totalorder %s26, 0
    %p143 = por %p141, %p142
    %s144 = ssub.s32 %s28, %s35
    %p145 = scmp.eq.s32.totalorder %s144, 0
    %s147 = sadd.s32 %s146, 1
    %s148 = scalar_select %p145, %s146, %s147
    %p151 = pneg %p145
    %p152 = scmp.eq.s32.totalorder %s20, 1
    %p153 = por %p151, %p152
    %p154 = scmp.ne.s32.totalorder %s146, %s149
    %p155 = scmp.eq.s32.totalorder %s20, 0
    %p156 = por %p154, %p155
    %p157 = scmp.ne.s32.totalorder %s146, %s149
    %p158 = scmp.eq.s32.totalorder %s25, 1
    %p159 = por %p157, %p158
    %p160 = scmp.ne.s32.totalorder %s149, %s150
    %p161 = scmp.eq.s32.totalorder %s25, 0
    %p162 = por %p160, %p161
    %p163 = scmp.ne.s32.totalorder %s149, %s150
    %p164 = scmp.eq.s32.totalorder %s26, 1
    %p165 = por %p163, %p164
    %p167 = scmp.ne.s32.totalorder %s150, %s166
    %p168 = scmp.eq.s32.totalorder %s26, 0
    %p169 = por %p167, %p168
    %s170 = ssub.s32 %s28, %s35
    %p171 = scmp.eq.s32.totalorder %s170, 0
    %s173 = sadd.s32 %s172, 1
    %s174 = scalar_select %p171, %s172, %s173
    %p177 = pneg %p171
    %p178 = scmp.eq.s32.totalorder %s20, 1
    %p179 = por %p177, %p178
    %p180 = scmp.ne.s32.totalorder %s172, %s175
    %p181 = scmp.eq.s32.totalorder %s20, 0
    %p182 = por %p180, %p181
    %p183 = scmp.ne.s32.totalorder %s172, %s175
    %p184 = scmp.eq.s32.totalorder %s25, 1
    %p185 = por %p183, %p184
    %p186 = scmp.ne.s32.totalorder %s175, %s176
    %p187 = scmp.eq.s32.totalorder %s25, 0
    %p188 = por %p186, %p187
    %p189 = scmp.ne.s32.totalorder %s175, %s176
    %p190 = scmp.eq.s32.totalorder %s26, 1
    %p191 = por %p189, %p190
    %p193 = scmp.ne.s32.totalorder %s176, %s192
    %p194 = scmp.eq.s32.totalorder %s26, 0
    %p195 = por %p193, %p194
    %s196 = ssub.s32 %s28, %s35
    %p197 = scmp.eq.s32.totalorder %s196, 0
    %s199 = sadd.s32 %s198, 1
    %s200 = scalar_select %p197, %s198, %s199
    %p203 = pneg %p197
    %p204 = scmp.eq.s32.totalorder %s20, 1
    %p205 = por %p203, %p204
    %p206 = scmp.ne.s32.totalorder %s198, %s201
    %p207 = scmp.eq.s32.totalorder %s20, 0
    %p208 = por %p206, %p207
    %p209 = scmp.ne.s32.totalorder %s198, %s201
    %p210 = scmp.eq.s32.totalorder %s25, 1
    %p211 = por %p209, %p210
    %p212 = scmp.ne.s32.totalorder %s201, %s202
    %p213 = scmp.eq.s32.totalorder %s25, 0
    %p214 = por %p212, %p213
    %p215 = scmp.ne.s32.totalorder %s201, %s202
    %p216 = scmp.eq.s32.totalorder %s26, 1
    %p217 = por %p215, %p216
    %p219 = scmp.ne.s32.totalorder %s202, %s218
    %p220 = scmp.eq.s32.totalorder %s26, 0
    %p221 = por %p219, %p220
    %s222 = ssub.s32 %s28, %s35
    %p223 = scmp.eq.s32.totalorder %s222, 0
    %s225 = sadd.s32 %s224, 1
    %s226 = scalar_select %p223, %s224, %s225
    %p229 = pneg %p223
    %p230 = scmp.eq.s32.totalorder %s20, 1
    %p231 = por %p229, %p230
    %p232 = scmp.ne.s32.totalorder %s224, %s227
    %p233 = scmp.eq.s32.totalorder %s20, 0
    %p234 = por %p232, %p233
    %p235 = scmp.ne.s32.totalorder %s224, %s227
    %p236 = scmp.eq.s32.totalorder %s25, 1
    %p237 = por %p235, %p236
    %p238 = scmp.ne.s32.totalorder %s227, %s228
    %p239 = scmp.eq.s32.totalorder %s25, 0
    %p240 = por %p238, %p239
    %p241 = scmp.ne.s32.totalorder %s227, %s228
    %p242 = scmp.eq.s32.totalorder %s26, 1
    %p243 = por %p241, %p242
    %p245 = scmp.ne.s32.totalorder %s228, %s244
    %p246 = scmp.eq.s32.totalorder %s26, 0
    %p247 = por %p245, %p246
    %s248 = ssub.s32 %s28, %s35
    %p249 = scmp.eq.s32.totalorder %s248, 0
    %s251 = sadd.s32 %s250, 1
    %s252 = scalar_select %p249, %s250, %s251
    %p255 = pneg %p249
    %p256 = scmp.eq.s32.totalorder %s20, 1
    %p257 = por %p255, %p256
    %p258 = scmp.ne.s32.totalorder %s250, %s253
    %p259 = scmp.eq.s32.totalorder %s20, 0
    %p260 = por %p258, %p259
    %p261 = scmp.ne.s32.totalorder %s250, %s253
    %p262 = scmp.eq.s32.totalorder %s25, 1
    %p263 = por %p261, %p262
    %p264 = scmp.ne.s32.totalorder %s253, %s254
    %p265 = scmp.eq.s32.totalorder %s25, 0
    %p266 = por %p264, %p265
    %p267 = scmp.ne.s32.totalorder %s253, %s254
    %p268 = scmp.eq.s32.totalorder %s26, 1
    %p269 = por %p267, %p268
    %p271 = scmp.ne.s32.totalorder %s254, %s270
    %p272 = scmp.eq.s32.totalorder %s26, 0
    %p273 = por %p271, %p272
    %s274 = ssub.s32 %s28, %s35
    %p275 = scmp.eq.s32.totalorder %s274, 0
    %s277 = sadd.s32 %s276, 1
    %s278 = scalar_select %p275, %s276, %s277
    %p281 = pneg %p275
    %p282 = scmp.eq.s32.totalorder %s20, 1
    %p283 = por %p281, %p282
    %p284 = scmp.ne.s32.totalorder %s276, %s279
    %p285 = scmp.eq.s32.totalorder %s20, 0
    %p286 = por %p284, %p285
    %p287 = scmp.ne.s32.totalorder %s276, %s279
    %p288 = scmp.eq.s32.totalorder %s25, 1
    %p289 = por %p287, %p288
    %p290 = scmp.ne.s32.totalorder %s279, %s280
    %p291 = scmp.eq.s32.totalorder %s25, 0
    %p292 = por %p290, %p291
    %p293 = scmp.ne.s32.totalorder %s279, %s280
    %p294 = scmp.eq.s32.totalorder %s26, 1
    %p295 = por %p293, %p294
    %p297 = scmp.ne.s32.totalorder %s280, %s296
    %p298 = scmp.eq.s32.totalorder %s26, 0
    %p299 = por %p297, %p298
    %s300 = ssub.s32 %s28, %s35
    %p301 = scmp.eq.s32.totalorder %s300, 0
    %s303 = sadd.s32 %s302, 1
    %s304 = scalar_select %p301, %s302, %s303
    %p307 = pneg %p301
    %p308 = scmp.eq.s32.totalorder %s20, 1
    %p309 = por %p307, %p308
    %p310 = scmp.ne.s32.totalorder %s302, %s305
    %p311 = scmp.eq.s32.totalorder %s20, 0
    %p312 = por %p310, %p311
    %p313 = scmp.ne.s32.totalorder %s302, %s305
    %p314 = scmp.eq.s32.totalorder %s25, 1
    %p315 = por %p313, %p314
    %p316 = scmp.ne.s32.totalorder %s305, %s306
    %p317 = scmp.eq.s32.totalorder %s25, 0
    %p318 = por %p316, %p317
    %p319 = scmp.ne.s32.totalorder %s305, %s306
    %p320 = scmp.eq.s32.totalorder %s26, 1
    %p321 = por %p319, %p320
    %p323 = scmp.ne.s32.totalorder %s306, %s322
    %p324 = scmp.eq.s32.totalorder %s26, 0
    %p325 = por %p323, %p324
    %s326 = ssub.s32 %s28, %s35
    %p327 = scmp.eq.s32.totalorder %s326, 0
    %s329 = sadd.s32 %s328, 1
    %s330 = scalar_select %p327, %s328, %s329
    %p333 = pneg %p327
    %p334 = scmp.eq.s32.totalorder %s20, 1
    %p335 = por %p333, %p334
    %p336 = scmp.ne.s32.totalorder %s328, %s331
    %p337 = scmp.eq.s32.totalorder %s20, 0
    %p338 = por %p336, %p337
    %p339 = scmp.ne.s32.totalorder %s328, %s331
    %p340 = scmp.eq.s32.totalorder %s25, 1
    %p341 = por %p339, %p340
    %p342 = scmp.ne.s32.totalorder %s331, %s332
    %p343 = scmp.eq.s32.totalorder %s25, 0
    %p344 = por %p342, %p343
    %p345 = scmp.ne.s32.totalorder %s331, %s332
    %p346 = scmp.eq.s32.totalorder %s26, 1
    %p347 = por %p345, %p346
    %p349 = scmp.ne.s32.totalorder %s332, %s348
    %p350 = scmp.eq.s32.totalorder %s26, 0
    %p351 = por %p349, %p350
    %s352 = ssub.s32 %s28, %s35
    %p353 = scmp.eq.s32.totalorder %s352, 0
    %s355 = sadd.s32 %s354, 1
    %s356 = scalar_select %p353, %s354, %s355
    %p359 = pneg %p353
    %p360 = scmp.eq.s32.totalorder %s20, 1
    %p361 = por %p359, %p360
    %p362 = scmp.ne.s32.totalorder %s354, %s357
    %p363 = scmp.eq.s32.totalorder %s20, 0
    %p364 = por %p362, %p363
    %p365 = scmp.ne.s32.totalorder %s354, %s357
    %p366 = scmp.eq.s32.totalorder %s25, 1
    %p367 = por %p365, %p366
    %p368 = scmp.ne.s32.totalorder %s357, %s358
    %p369 = scmp.eq.s32.totalorder %s25, 0
    %p370 = por %p368, %p369
    %p371 = scmp.ne.s32.totalorder %s357, %s358
    %p372 = scmp.eq.s32.totalorder %s26, 1
    %p373 = por %p371, %p372
    %p375 = scmp.ne.s32.totalorder %s358, %s374
    %p376 = scmp.eq.s32.totalorder %s26, 0
    %p377 = por %p375, %p376
    %s378 = ssub.s32 %s28, %s35
    %p379 = scmp.eq.s32.totalorder %s378, 0
    %s381 = sadd.s32 %s380, 1
    %s382 = scalar_select %p379, %s380, %s381
    %p385 = pneg %p379
    %p386 = scmp.eq.s32.totalorder %s20, 1
    %p387 = por %p385, %p386
    %p388 = scmp.ne.s32.totalorder %s380, %s383
    %p389 = scmp.eq.s32.totalorder %s20, 0
    %p390 = por %p388, %p389
    %p391 = scmp.ne.s32.totalorder %s380, %s383
    %p392 = scmp.eq.s32.totalorder %s25, 1
    %p393 = por %p391, %p392
    %p394 = scmp.ne.s32.totalorder %s383, %s384
    %p395 = scmp.eq.s32.totalorder %s25, 0
    %p396 = por %p394, %p395
    %p397 = scmp.ne.s32.totalorder %s383, %s384
    %p398 = scmp.eq.s32.totalorder %s26, 1
    %p399 = por %p397, %p398
    %p401 = scmp.ne.s32.totalorder %s384, %s400
    %p402 = scmp.eq.s32.totalorder %s26, 0
    %p403 = por %p401, %p402
    %s404 = ssub.s32 %s27, %s39
    %p405 = scmp.eq.s32.totalorder %s404, 0
    %s407 = sadd.s32 %s406, 1
    %s408 = scalar_select %p405, %s406, %s407
    %p411 = pneg %p405
    %p412 = scmp.eq.s32.totalorder %s20, 1
    %p413 = por %p411, %p412
    %p414 = scmp.ne.s32.totalorder %s406, %s409
    %p415 = scmp.eq.s32.totalorder %s20, 0
    %p416 = por %p414, %p415
    %p417 = scmp.ne.s32.totalorder %s406, %s409
    %p418 = scmp.eq.s32.totalorder %s25, 1
    %p419 = por %p417, %p418
    %p420 = scmp.ne.s32.totalorder %s409, %s410
    %p421 = scmp.eq.s32.totalorder %s25, 0
    %p422 = por %p420, %p421
    %p423 = scmp.ne.s32.totalorder %s409, %s410
    %p424 = scmp.eq.s32.totalorder %s26, 1
    %p425 = por %p423, %p424
    %p427 = scmp.ne.s32.totalorder %s410, %s426
    %p428 = scmp.eq.s32.totalorder %s26, 0
    %p429 = por %p427, %p428
    %p430 = scmp.le.s32.totalorder 1, %s20
    %p431 = scmp.lt.s32.totalorder %s20, 3
    %p432 = pnand %p430, %p431
    %p433 = pneg %p432
    // Predicated region
    $region9: #{bert4rec_forward.5} parent=5 // pred_check
      _
    $region10: #{bert4rec_forward.5} parent=5 // pred_check_branch
      %435 = sbr.rel (%p432) target = $region12
    $region11: #{bert4rec_forward.5} parent=5 // pred_region
      %s436 = ssub.s32 %s20, 1
      // Predicated region
      $region13: #{bert4rec_forward.5} parent=11 // pred_check
        %p437 = pneg %p58
      $region14: #{bert4rec_forward.5} parent=11 // pred_check_branch
        %439 = sbr.rel (%p437) target = $region16
      $region15: #{bert4rec_forward.5} parent=11 // pred_region
        %s440 = smul.u32 2, %s29
        %p441 = scmp.lt.s32.totalorder %s440, 1
        %s442 = scalar_select %p441, %s440, 1
        %s443 = smul.addr %s442, 8
        %s444 = scalar_lea.vmem %s0, %s443
        %s445 = smul.u32 2, %s29
      $region16: #{bert4rec_forward.5} parent=11 // pred_fallthru
        _
      // Predicated region
      $region17: #{bert4rec_forward.5} parent=11 // pred_check
        %p446 = pneg %p84
      $region18: #{bert4rec_forward.5} parent=11 // pred_check_branch
        %448 = sbr.rel (%p446) target = $region20
      $region19: #{bert4rec_forward.5} parent=11 // pred_region
        %s449 = smul.u32 2, %s29
        %p450 = scmp.lt.s32.totalorder %s449, 1
        %s451 = scalar_select %p450, %s449, 1
        %s452 = scalar_lea.vmem %s1, %s451
        %s453 = smul.u32 2, %s29
      $region20: #{bert4rec_forward.5} parent=11 // pred_fallthru
        _
    $region12: #{bert4rec_forward.5} parent=5 // pred_fallthru
      _
    %p454 = scmp.lt.s32.totalorder %s20, 2
    // Predicated region
    $region21: #{bert4rec_forward.5} parent=5 // pred_check
      %p455 = pneg %p454
    $region22: #{bert4rec_forward.5} parent=5 // pred_check_branch
      %457 = sbr.rel (%p455) target = $region24
    $region23: #{bert4rec_forward.5} parent=5 // pred_region
      // Predicated region
      $region25: #{bert4rec_forward.5} parent=23 // pred_check
        %p458 = pneg %p104
      $region26: #{bert4rec_forward.5} parent=23 // pred_check_branch
        %460 = sbr.rel (%p458) target = $region28
      $region27: #{bert4rec_forward.5} parent=23 // pred_region
        %p461 = scmp.lt.s32.totalorder %s28, 1
        %s462 = scalar_select %p461, %s28, 1
        %s463 = smul.addr %s462, 4
        %s464 = smul.addr %s463, 4
        %s465 = scalar_lea.vmem %s2, %s464
      $region28: #{bert4rec_forward.5} parent=23 // pred_fallthru
        _
      // Predicated region
      $region29: #{bert4rec_forward.5} parent=23 // pred_check
        %p466 = pneg %p130
      $region30: #{bert4rec_forward.5} parent=23 // pred_check_branch
        %468 = sbr.rel (%p466) target = $region32
      $region31: #{bert4rec_forward.5} parent=23 // pred_region
        %p469 = scmp.lt.s32.totalorder %s28, 1
        %s470 = scalar_select %p469, %s28, 1
        %s471 = scalar_lea.vmem %s3, %s470
      $region32: #{bert4rec_forward.5} parent=23 // pred_fallthru
        _
      // Predicated region
      $region33: #{bert4rec_forward.5} parent=23 // pred_check
        %p472 = pneg %p156
      $region34: #{bert4rec_forward.5} parent=23 // pred_check_branch
        %474 = sbr.rel (%p472) target = $region36
      $region35: #{bert4rec_forward.5} parent=23 // pred_region
        %p475 = scmp.lt.s32.totalorder %s28, 1
        %s476 = scalar_select %p475, %s28, 1
        %s477 = smul.addr %s476, 4
        %s478 = smul.addr %s477, 4
        %s479 = scalar_lea.vmem %s4, %s478
      $region36: #{bert4rec_forward.5} parent=23 // pred_fallthru
        _
      // Predicated region
      $region37: #{bert4rec_forward.5} parent=23 // pred_check
        %p480 = pneg %p182
      $region38: #{bert4rec_forward.5} parent=23 // pred_check_branch
        %482 = sbr.rel (%p480) target = $region40
      $region39: #{bert4rec_forward.5} parent=23 // pred_region
        %p483 = scmp.lt.s32.totalorder %s28, 1
        %s484 = scalar_select %p483, %s28, 1
        %s485 = scalar_lea.vmem %s5, %s484
      $region40: #{bert4rec_forward.5} parent=23 // pred_fallthru
        _
      // Predicated region
      $region41: #{bert4rec_forward.5} parent=23 // pred_check
        %p486 = pneg %p208
      $region42: #{bert4rec_forward.5} parent=23 // pred_check_branch
        %488 = sbr.rel (%p486) target = $region44
      $region43: #{bert4rec_forward.5} parent=23 // pred_region
        %p489 = scmp.lt.s32.totalorder %s28, 1
        %s490 = scalar_select %p489, %s28, 1
        %s491 = scalar_lea.vmem %s6, %s490
      $region44: #{bert4rec_forward.5} parent=23 // pred_fallthru
        _
      // Predicated region
      $region45: #{bert4rec_forward.5} parent=23 // pred_check
        %p492 = pneg %p234
      $region46: #{bert4rec_forward.5} parent=23 // pred_check_branch
        %494 = sbr.rel (%p492) target = $region48
      $region47: #{bert4rec_forward.5} parent=23 // pred_region
        %p495 = scmp.lt.s32.totalorder %s28, 1
        %s496 = scalar_select %p495, %s28, 1
        %s497 = scalar_lea.vmem %s7, %s496
      $region48: #{bert4rec_forward.5} parent=23 // pred_fallthru
        _
      // Predicated region
      $region49: #{bert4rec_forward.5} parent=23 // pred_check
        %p498 = pneg %p260
      $region50: #{bert4rec_forward.5} parent=23 // pred_check_branch
        %500 = sbr.rel (%p498) target = $region52
      $region51: #{bert4rec_forward.5} parent=23 // pred_region
        %p501 = scmp.lt.s32.totalorder %s28, 1
        %s502 = scalar_select %p501, %s28, 1
        %s503 = smul.addr %s502, 4
        %s504 = smul.addr %s503, 4
        %s505 = scalar_lea.vmem %s8, %s504
      $region52: #{bert4rec_forward.5} parent=23 // pred_fallthru
        _
      // Predicated region
      $region53: #{bert4rec_forward.5} parent=23 // pred_check
        %p506 = pneg %p286
      $region54: #{bert4rec_forward.5} parent=23 // pred_check_branch
        %508 = sbr.rel (%p506) target = $region56
      $region55: #{bert4rec_forward.5} parent=23 // pred_region
        %p509 = scmp.lt.s32.totalorder %s28, 1
        %s510 = scalar_select %p509, %s28, 1
        %s511 = scalar_lea.vmem %s9, %s510
      $region56: #{bert4rec_forward.5} parent=23 // pred_fallthru
        _
      // Predicated region
      $region57: #{bert4rec_forward.5} parent=23 // pred_check
        %p512 = pneg %p312
      $region58: #{bert4rec_forward.5} parent=23 // pred_check_branch
        %514 = sbr.rel (%p512) target = $region60
      $region59: #{bert4rec_forward.5} parent=23 // pred_region
        %p515 = scmp.lt.s32.totalorder %s28, 1
        %s516 = scalar_select %p515, %s28, 1
        %s517 = smul.addr %s516, 16
        %s518 = smul.addr %s517, 4
        %s519 = scalar_lea.vmem %s10, %s518
      $region60: #{bert4rec_forward.5} parent=23 // pred_fallthru
        _
      // Predicated region
      $region61: #{bert4rec_forward.5} parent=23 // pred_check
        %p520 = pneg %p338
      $region62: #{bert4rec_forward.5} parent=23 // pred_check_branch
        %522 = sbr.rel (%p520) target = $region64
      $region63: #{bert4rec_forward.5} parent=23 // pred_region
        %p523 = scmp.lt.s32.totalorder %s28, 1
        %s524 = scalar_select %p523, %s28, 1
        %s525 = scalar_lea.vmem %s11, %s524
      $region64: #{bert4rec_forward.5} parent=23 // pred_fallthru
        _
      // Predicated region
      $region65: #{bert4rec_forward.5} parent=23 // pred_check
        %p526 = pneg %p364
      $region66: #{bert4rec_forward.5} parent=23 // pred_check_branch
        %528 = sbr.rel (%p526) target = $region68
      $region67: #{bert4rec_forward.5} parent=23 // pred_region
        %p529 = scmp.lt.s32.totalorder %s28, 1
        %s530 = scalar_select %p529, %s28, 1
        %s531 = scalar_lea.vmem %s12, %s530
      $region68: #{bert4rec_forward.5} parent=23 // pred_fallthru
        _
      // Predicated region
      $region69: #{bert4rec_forward.5} parent=23 // pred_check
        %p532 = pneg %p390
      $region70: #{bert4rec_forward.5} parent=23 // pred_check_branch
        %534 = sbr.rel (%p532) target = $region72
      $region71: #{bert4rec_forward.5} parent=23 // pred_region
        %p535 = scmp.lt.s32.totalorder %s28, 1
        %s536 = scalar_select %p535, %s28, 1
        %s537 = scalar_lea.vmem %s13, %s536
      $region72: #{bert4rec_forward.5} parent=23 // pred_fallthru
        _
    $region24: #{bert4rec_forward.5} parent=5 // pred_fallthru
      _
    %p538 = scmp.le.s32.totalorder 1, %s20
    %p539 = scmp.lt.s32.totalorder %s20, 3
    %p540 = pnand %p538, %p539
    %p541 = pneg %p540
    // Predicated region
    $region73: #{bert4rec_forward.5} parent=5 // pred_check
      _
    $region74: #{bert4rec_forward.5} parent=5 // pred_check_branch
      %543 = sbr.rel (%p540) target = $region76
    $region75: #{bert4rec_forward.5} parent=5 // pred_region
      %s544 = ssub.s32 %s20, 1
      %s545 = smul.u32 2, %s29
      %p546 = scmp.lt.s32.totalorder %s545, 1
      %s547 = scalar_select %p546, %s545, 1
      %s548 = smul.addr %s547, 8
      %s549 = scalar_lea.vmem %s0, %s548
      %p550 = pneg %p58
      %p551 = pneg %p55
      %s552 = smul.u32 2, %s29
      %p553 = scmp.lt.s32.totalorder %s552, 1
      %s554 = scalar_select %p553, %s552, 1
      %s555 = scalar_lea.vmem %s1, %s554
      %p556 = pneg %p84
      %p557 = pneg %p81
      %p558 = scmp.lt.s32.totalorder %s30, 1
      %s559 = scalar_select %p558, %s30, 1
      %s560 = smul.addr %s559, 4
      %s561 = smul.addr %s560, 4
      %s562 = scalar_lea.vmem %s2, %s561
      %p563 = pneg %p110
      %p564 = pneg %p107
      %p565 = scmp.lt.s32.totalorder %s30, 1
      %s566 = scalar_select %p565, %s30, 1
      %s567 = scalar_lea.vmem %s3, %s566
      %p568 = pneg %p136
      %p569 = pneg %p133
      %p570 = scmp.lt.s32.totalorder %s30, 1
      %s571 = scalar_select %p570, %s30, 1
      %s572 = smul.addr %s571, 4
      %s573 = smul.addr %s572, 4
      %s574 = scalar_lea.vmem %s4, %s573
      %p575 = pneg %p162
      %p576 = pneg %p159
      %p577 = scmp.lt.s32.totalorder %s30, 1
      %s578 = scalar_select %p577, %s30, 1
      %s579 = scalar_lea.vmem %s5, %s578
      %p580 = pneg %p188
      %p581 = pneg %p185
      %p582 = scmp.lt.s32.totalorder %s30, 1
      %s583 = scalar_select %p582, %s30, 1
      %s584 = scalar_lea.vmem %s6, %s583
      %p585 = pneg %p214
      %p586 = pneg %p211
      %p587 = scmp.lt.s32.totalorder %s30, 1
      %s588 = scalar_select %p587, %s30, 1
      %s589 = scalar_lea.vmem %s7, %s588
      %p590 = pneg %p240
      %p591 = pneg %p237
      %p592 = scmp.lt.s32.totalorder %s30, 1
      %s593 = scalar_select %p592, %s30, 1
      %s594 = smul.addr %s593, 4
      %s595 = smul.addr %s594, 4
      %s596 = scalar_lea.vmem %s8, %s595
      %p597 = pneg %p266
      %p598 = pneg %p263
      %p599 = scmp.lt.s32.totalorder %s30, 1
      %s600 = scalar_select %p599, %s30, 1
      %s601 = scalar_lea.vmem %s9, %s600
      %p602 = pneg %p292
      %p603 = pneg %p289
      %p604 = scmp.lt.s32.totalorder %s30, 1
      %s605 = scalar_select %p604, %s30, 1
      %s606 = smul.addr %s605, 16
      %s607 = smul.addr %s606, 4
      %s608 = scalar_lea.vmem %s10, %s607
      %p609 = pneg %p318
      %p610 = pneg %p315
      %p611 = scmp.lt.s32.totalorder %s30, 1
      %s612 = scalar_select %p611, %s30, 1
      %s613 = scalar_lea.vmem %s11, %s612
      %p614 = pneg %p344
      %p615 = pneg %p341
      %p616 = scmp.lt.s32.totalorder %s30, 1
      %s617 = scalar_select %p616, %s30, 1
      %s618 = scalar_lea.vmem %s12, %s617
      %p619 = pneg %p370
      %p620 = pneg %p367
      %p621 = scmp.lt.s32.totalorder %s30, 1
      %s622 = scalar_select %p621, %s30, 1
      %s623 = scalar_lea.vmem %s13, %s622
      %p624 = pneg %p396
      %p625 = pneg %p393
      %p626 = pneg %p422
      %p627 = pneg %p419
      %s628 = smul.u32 2, %s29
      %p629 = scmp.lt.s32.totalorder %s628, 1
      %s630 = scalar_select %p629, %s628, 1
      %s631 = smul.addr %s630, 8
      %s632 = scalar_lea.vmem %s14, %s631
      %s633 = smul.u32 2, %s29
      %p634 = scmp.lt.s32.totalorder %s633, 1
      %s635 = scalar_select %p634, %s633, 1
      %s636 = smul.addr %s635, 8
      %s637 = scalar_lea.vmem %s0, %s636
      %s638 = smul.u32 2, %s29
      %s639 = smul.u32 2, %s29
      %p640 = scmp.lt.s32.totalorder %s639, 1
      %s641 = scalar_select %p640, %s639, 1
      %s642 = scalar_lea.vmem %s1, %s641
      %s643 = smul.u32 2, %s29
      %p644 = scmp.lt.s32.totalorder %s30, 1
      %s645 = scalar_select %p644, %s30, 1
      %s646 = smul.addr %s645, 4
      %s647 = smul.addr %s646, 4
      %s648 = scalar_lea.vmem %s2, %s647
      %p649 = scmp.lt.s32.totalorder %s30, 1
      %s650 = scalar_select %p649, %s30, 1
      %s651 = scalar_lea.vmem %s3, %s650
      %p652 = scmp.lt.s32.totalorder %s30, 1
      %s653 = scalar_select %p652, %s30, 1
      %s654 = smul.addr %s653, 4
      %s655 = smul.addr %s654, 4
      %s656 = scalar_lea.vmem %s4, %s655
      %p657 = scmp.lt.s32.totalorder %s30, 1
      %s658 = scalar_select %p657, %s30, 1
      %s659 = scalar_lea.vmem %s5, %s658
      %p660 = scmp.lt.s32.totalorder %s30, 1
      %s661 = scalar_select %p660, %s30, 1
      %s662 = scalar_lea.vmem %s6, %s661
      %p663 = scmp.lt.s32.totalorder %s30, 1
      %s664 = scalar_select %p663, %s30, 1
      %s665 = scalar_lea.vmem %s7, %s664
      %p666 = scmp.lt.s32.totalorder %s30, 1
      %s667 = scalar_select %p666, %s30, 1
      %s668 = smul.addr %s667, 4
      %s669 = smul.addr %s668, 4
      %s670 = scalar_lea.vmem %s8, %s669
      %p671 = scmp.lt.s32.totalorder %s30, 1
      %s672 = scalar_select %p671, %s30, 1
      %s673 = scalar_lea.vmem %s9, %s672
      %p674 = scmp.lt.s32.totalorder %s30, 1
      %s675 = scalar_select %p674, %s30, 1
      %s676 = smul.addr %s675, 16
      %s677 = smul.addr %s676, 4
      %s678 = scalar_lea.vmem %s10, %s677
      %p679 = scmp.lt.s32.totalorder %s30, 1
      %s680 = scalar_select %p679, %s30, 1
      %s681 = scalar_lea.vmem %s11, %s680
      %p682 = scmp.lt.s32.totalorder %s30, 1
      %s683 = scalar_select %p682, %s30, 1
      %s684 = scalar_lea.vmem %s12, %s683
      %p685 = scmp.lt.s32.totalorder %s30, 1
      %s686 = scalar_select %p685, %s30, 1
      %s687 = scalar_lea.vmem %s13, %s686
      %s688 = smul.u32 2, %s29
      %p689 = scmp.lt.s32.totalorder %s688, 1
      %s690 = scalar_select %p689, %s688, 1
      %s691 = smul.addr %s690, 8
      %s692 = scalar_lea.vmem %s14, %s691
      %s693 = smul.u32 2, %s29
      %p695 = scmp.eq.s32.totalorder %s30, 0
      // Predicated region
      $region77: #{bert4rec_forward.5} parent=75 // pred_check
        %p696 = pneg %p695
      $region78: #{bert4rec_forward.5} parent=75 // pred_check_branch
        %698 = sbr.rel (%p696) target = $region80
      $region79: #{bert4rec_forward.5} parent=75 // pred_region
        %v699 = vld [vmem:[%s637] sm:$0xff]
        %v700 = vld [vmem:[%s637 + $0x8] sm:$0xff]
        %vm701 = vcmask 261120
        %702 = vst.msk [vmem:[%s692] sm:$0xff] %vm701, %v699
        %703 = vst.msk [vmem:[%s692 + $0x8] sm:$0xff] %vm701, %v700
      $region80: #{bert4rec_forward.5} parent=75 // pred_fallthru
        _
      %v704 = vld [vmem:[%s692] sm:$0xff]
      %v705 = vld [vmem:[%s692 + $0x8] sm:$0xff]
      %v706 = vpack.c.bf16 %v705, %v704
      %v707 = vld [vmem:[%s648] sm:$0xf]
      %v708 = vld [vmem:[%s648 + $0x4] sm:$0xf]
      %v709 = vld [vmem:[%s648 + $0x8] sm:$0xf]
      %v710 = vld [vmem:[%s648 + $0xc] sm:$0xf]
      %v711 = vld [vmem:[%s651] sm:$0x1]
      %v713 = vlaneseq
      %v714 = vshrl.u32 %v713, 7
      %v715 = vsub.s32 0, %v714
      %v716 = vrot.slane %v711, %v715
      %v722 = vunpack.c.l.b16 %v707
      %v723 = vunpack.c.l.b16 %v708
      %v724 = vunpack.c.l.b16 %v709
      %v725 = vunpack.c.l.b16 %v710
      %v726 = vpack.c.b16 %v723, %v722
      %v727 = vpack.c.b16 %v725, %v724
      %vm730 = vcmask 261120
      %v732 = vsel %vm730, %v706, 0
      %734 = vmatprep.subr.bf16.mxu0 0
      %735 = vmatpush1.bf16.msra.mxu0 %v726
      %736 = vmatprep.subr.bf16.mxu0 0
      %737 = vmatpush1.bf16.msra.mxu0 %v727
      %738 = vmatprep.subr.bf16.mxu0 0
      %739 = vmatpush1.bf16.msra.mxu0 0
      %740 = vmatprep.subr.bf16.mxu0 0
      %741 = vmatpush1.bf16.msra.mxu0 0
      %742 = vmatprep.subr.bf16.mxu0 0
      %743 = vmatpush1.bf16.msra.mxu0 0
      %744 = vmatprep.subr.bf16.mxu0 0
      %745 = vmatpush1.bf16.msra.mxu0 0
      %746 = vmatprep.subr.bf16.mxu0 0
      %747 = vmatpush1.bf16.msra.mxu0 0
      %748 = vmatprep.subr.bf16.mxu0 0
      %749 = vmatpush1.bf16.msra.mxu0 0
      %750 = vmatprep.subr.bf16.mxu0 0
      %751 = vmatpush1.bf16.msra.mxu0 0
      %752 = vmatprep.subr.bf16.mxu0 0
      %753 = vmatpush1.bf16.msra.mxu0 0
      %754 = vmatprep.subr.bf16.mxu0 0
      %755 = vmatpush1.bf16.msra.mxu0 0
      %756 = vmatprep.subr.bf16.mxu0 0
      %757 = vmatpush1.bf16.msra.mxu0 0
      %758 = vmatprep.subr.bf16.mxu0 0
      %759 = vmatpush1.bf16.msra.mxu0 0
      %760 = vmatprep.subr.bf16.mxu0 0
      %761 = vmatpush1.bf16.msra.mxu0 0
      %762 = vmatprep.subr.bf16.mxu0 0
      %763 = vmatpush1.bf16.msra.mxu0 0
      %764 = vmatprep.subr.bf16.mxu0 0
      %765 = vmatpush1.bf16.msra.mxu0 0
      %766 = vmatprep.mubr.bf16.mxu0 0
      %767 = vmatmul.mubr.bf16.gmra.mrb[0].mxu0 %v732
      %v768 = vpop.f32.mrb[0].mxu0
      %v769 = vadd.f32 %v716, %v768
      %v770 = vpop.f32.mrb[0].mxu0
      %v771 = vpop.f32.mrb[0].mxu0
      %v772 = vadd.f32 %v716, %v771
      %v773 = vpop.f32.mrb[0].mxu0
      %774 = vdwg.mxu0
      %v775 = vpack.c.bf16 %v772, %v769
      %v777 = vunpack.c.l.b16 %v775
      %v778 = vunpack.c.h.b16 %v775
      %v779 = vpack.c.b16 %v777, %v777
      %v780 = vpack.c.b16 %v778, %v778
      %781 = vrot.lane.b32.xlu0 %v779, 112
      %v782 = vpop.permute.xlu0 %781
      %783 = vrot.lane.b32.xlu0 %v780, 112
      %v784 = vpop.permute.xlu0 %783
      %v785 = vld [vmem:[%s642] sm:$0x1]
      %v786 = vld [vmem:[%s642 + $0x1] sm:$0x1]
      %787 = vrot.lane.b32.xlu0 %v779, 96
      %v788 = vpop.permute.xlu0 %787
      %vm789 = vcmask 130048
      %v791 = vsel %vm789, %v779, 0
      %v794 = vsel %vm789, %v788, 0
      %796 = vmatprep.subr.bf16.mxu0 0
      %797 = vmatpush1.bf16.xpose.msra.mxu0 %v794
      %798 = vmatprep.subr.bf16.mxu0 0
      %799 = vmatpush1.bf16.xpose.msra.mxu0 0
      %800 = vmatprep.subr.bf16.mxu0 0
      %801 = vmatpush1.bf16.xpose.msra.mxu0 0
      %802 = vmatprep.subr.bf16.mxu0 0
      %803 = vmatpush1.bf16.xpose.msra.mxu0 0
      %804 = vmatprep.subr.bf16.mxu0 0
      %805 = vmatpush1.bf16.xpose.msra.mxu0 0
      %806 = vmatprep.subr.bf16.mxu0 0
      %807 = vmatpush1.bf16.xpose.msra.mxu0 0
      %808 = vmatprep.subr.bf16.mxu0 0
      %809 = vmatpush1.bf16.xpose.msra.mxu0 0
      %810 = vmatprep.subr.bf16.mxu0 0
      %811 = vmatpush1.bf16.xpose.msra.mxu0 0
      %812 = vmatprep.subr.bf16.mxu0 0
      %813 = vmatpush1.bf16.xpose.msra.mxu0 0
      %814 = vmatprep.subr.bf16.mxu0 0
      %815 = vmatpush1.bf16.xpose.msra.mxu0 0
      %816 = vmatprep.subr.bf16.mxu0 0
      %817 = vmatpush1.bf16.xpose.msra.mxu0 0
      %818 = vmatprep.subr.bf16.mxu0 0
      %819 = vmatpush1.bf16.xpose.msra.mxu0 0
      %820 = vmatprep.subr.bf16.mxu0 0
      %821 = vmatpush1.bf16.xpose.msra.mxu0 0
      %822 = vmatprep.subr.bf16.mxu0 0
      %823 = vmatpush1.bf16.xpose.msra.mxu0 0
      %824 = vmatprep.subr.bf16.mxu0 0
      %825 = vmatpush1.bf16.xpose.msra.mxu0 0
      %826 = vmatprep.subr.bf16.mxu0 0
      %827 = vmatpush1.bf16.xpose.msra.mxu0 0
      %828 = vmatprep.mubr.bf16.mxu0 0
      %829 = vmatmul.mubr.bf16.gmra.mrb[0].mxu0 %v791
      %v830 = vpop.f32.mrb[0].mxu0
      %v831 = vadd.f32 0.0, %v830
      %v832 = vpop.f32.mrb[0].mxu0
      %v833 = vpop.f32.mrb[0].mxu0
      %v834 = vpop.f32.mrb[0].mxu0
      %835 = vdwg.mxu0
      %836 = vrot.lane.b32.xlu0 %v780, 96
      %v837 = vpop.permute.xlu0 %836
      %v839 = vsel %vm789, %v780, 0
      %v842 = vsel %vm789, %v837, 0
      %844 = vmatprep.subr.bf16.mxu0 0
      %845 = vmatpush1.bf16.xpose.msra.mxu0 %v842
      %846 = vmatprep.subr.bf16.mxu0 0
      %847 = vmatpush1.bf16.xpose.msra.mxu0 0
      %848 = vmatprep.subr.bf16.mxu0 0
      %849 = vmatpush1.bf16.xpose.msra.mxu0 0
      %850 = vmatprep.subr.bf16.mxu0 0
      %851 = vmatpush1.bf16.xpose.msra.mxu0 0
      %852 = vmatprep.subr.bf16.mxu0 0
      %853 = vmatpush1.bf16.xpose.msra.mxu0 0
      %854 = vmatprep.subr.bf16.mxu0 0
      %855 = vmatpush1.bf16.xpose.msra.mxu0 0
      %856 = vmatprep.subr.bf16.mxu0 0
      %857 = vmatpush1.bf16.xpose.msra.mxu0 0
      %858 = vmatprep.subr.bf16.mxu0 0
      %859 = vmatpush1.bf16.xpose.msra.mxu0 0
      %860 = vmatprep.subr.bf16.mxu0 0
      %861 = vmatpush1.bf16.xpose.msra.mxu0 0
      %862 = vmatprep.subr.bf16.mxu0 0
      %863 = vmatpush1.bf16.xpose.msra.mxu0 0
      %864 = vmatprep.subr.bf16.mxu0 0
      %865 = vmatpush1.bf16.xpose.msra.mxu0 0
      %866 = vmatprep.subr.bf16.mxu0 0
      %867 = vmatpush1.bf16.xpose.msra.mxu0 0
      %868 = vmatprep.subr.bf16.mxu0 0
      %869 = vmatpush1.bf16.xpose.msra.mxu0 0
      %870 = vmatprep.subr.bf16.mxu0 0
      %871 = vmatpush1.bf16.xpose.msra.mxu0 0
      %872 = vmatprep.subr.bf16.mxu0 0
      %873 = vmatpush1.bf16.xpose.msra.mxu0 0
      %874 = vmatprep.subr.bf16.mxu0 0
      %875 = vmatpush1.bf16.xpose.msra.mxu0 0
      %876 = vmatprep.mubr.bf16.mxu0 0
      %877 = vmatmul.mubr.bf16.gmra.mrb[0].mxu0 %v839
      %v878 = vpop.f32.mrb[0].mxu0
      %v879 = vadd.f32 0.0, %v878
      %v880 = vpop.f32.mrb[0].mxu0
      %v881 = vpop.f32.mrb[0].mxu0
      %v882 = vpop.f32.mrb[0].mxu0
      %883 = vdwg.mxu0
      %v884 = vunpack.c.l.b16 %v782
      %v885 = vpack.c.b16 %v884, %v884
      %886 = vrot.lane.b32.xlu0 %v885, 96
      %v887 = vpop.permute.xlu0 %886
      %v889 = vsel %vm789, %v782, 0
      %v892 = vsel %vm789, %v887, 0
      %894 = vmatprep.subr.bf16.mxu0 0
      %895 = vmatpush1.bf16.xpose.msra.mxu0 %v892
      %896 = vmatprep.subr.bf16.mxu0 0
      %897 = vmatpush1.bf16.xpose.msra.mxu0 0
      %898 = vmatprep.subr.bf16.mxu0 0
      %899 = vmatpush1.bf16.xpose.msra.mxu0 0
      %900 = vmatprep.subr.bf16.mxu0 0
      %901 = vmatpush1.bf16.xpose.msra.mxu0 0
      %902 = vmatprep.subr.bf16.mxu0 0
      %903 = vmatpush1.bf16.xpose.msra.mxu0 0
      %904 = vmatprep.subr.bf16.mxu0 0
      %905 = vmatpush1.bf16.xpose.msra.mxu0 0
      %906 = vmatprep.subr.bf16.mxu0 0
      %907 = vmatpush1.bf16.xpose.msra.mxu0 0
      %908 = vmatprep.subr.bf16.mxu0 0
      %909 = vmatpush1.bf16.xpose.msra.mxu0 0
      %910 = vmatprep.subr.bf16.mxu0 0
      %911 = vmatpush1.bf16.xpose.msra.mxu0 0
      %912 = vmatprep.subr.bf16.mxu0 0
      %913 = vmatpush1.bf16.xpose.msra.mxu0 0
      %914 = vmatprep.subr.bf16.mxu0 0
      %915 = vmatpush1.bf16.xpose.msra.mxu0 0
      %916 = vmatprep.subr.bf16.mxu0 0
      %917 = vmatpush1.bf16.xpose.msra.mxu0 0
      %918 = vmatprep.subr.bf16.mxu0 0
      %919 = vmatpush1.bf16.xpose.msra.mxu0 0
      %920 = vmatprep.subr.bf16.mxu0 0
      %921 = vmatpush1.bf16.xpose.msra.mxu0 0
      %922 = vmatprep.subr.bf16.mxu0 0
      %923 = vmatpush1.bf16.xpose.msra.mxu0 0
      %924 = vmatprep.subr.bf16.mxu0 0
      %925 = vmatpush1.bf16.xpose.msra.mxu0 0
      %926 = vmatprep.mubr.bf16.mxu0 0
      %927 = vmatmul.mubr.bf16.gmra.mrb[0].mxu0 %v889
      %v928 = vpop.f32.mrb[0].mxu0
      %v929 = vadd.f32 0.0, %v928
      %v930 = vpop.f32.mrb[0].mxu0
      %v931 = vpop.f32.mrb[0].mxu0
      %v932 = vpop.f32.mrb[0].mxu0
      %933 = vdwg.mxu0
      %v934 = vunpack.c.l.b16 %v784
      %v935 = vpack.c.b16 %v934, %v934
      %936 = vrot.lane.b32.xlu0 %v935, 96
      %v937 = vpop.permute.xlu0 %936
      %v939 = vsel %vm789, %v784, 0
      %v942 = vsel %vm789, %v937, 0
      %944 = vmatprep.subr.bf16.mxu0 0
      %945 = vmatpush1.bf16.xpose.msra.mxu0 %v942
      %946 = vmatprep.subr.bf16.mxu0 0
      %947 = vmatpush1.bf16.xpose.msra.mxu0 0
      %948 = vmatprep.subr.bf16.mxu0 0
      %949 = vmatpush1.bf16.xpose.msra.mxu0 0
      %950 = vmatprep.subr.bf16.mxu0 0
      %951 = vmatpush1.bf16.xpose.msra.mxu0 0
      %952 = vmatprep.subr.bf16.mxu0 0
      %953 = vmatpush1.bf16.xpose.msra.mxu0 0
      %954 = vmatprep.subr.bf16.mxu0 0
      %955 = vmatpush1.bf16.xpose.msra.mxu0 0
      %956 = vmatprep.subr.bf16.mxu0 0
      %957 = vmatpush1.bf16.xpose.msra.mxu0 0
      %958 = vmatprep.subr.bf16.mxu0 0
      %959 = vmatpush1.bf16.xpose.msra.mxu0 0
      %960 = vmatprep.subr.bf16.mxu0 0
      %961 = vmatpush1.bf16.xpose.msra.mxu0 0
      %962 = vmatprep.subr.bf16.mxu0 0
      %963 = vmatpush1.bf16.xpose.msra.mxu0 0
      %964 = vmatprep.subr.bf16.mxu0 0
      %965 = vmatpush1.bf16.xpose.msra.mxu0 0
      %966 = vmatprep.subr.bf16.mxu0 0
      %967 = vmatpush1.bf16.xpose.msra.mxu0 0
      %968 = vmatprep.subr.bf16.mxu0 0
      %969 = vmatpush1.bf16.xpose.msra.mxu0 0
      %970 = vmatprep.subr.bf16.mxu0 0
      %971 = vmatpush1.bf16.xpose.msra.mxu0 0
      %972 = vmatprep.subr.bf16.mxu0 0
      %973 = vmatpush1.bf16.xpose.msra.mxu0 0
      %974 = vmatprep.subr.bf16.mxu0 0
      %975 = vmatpush1.bf16.xpose.msra.mxu0 0
      %976 = vmatprep.mubr.bf16.mxu0 0
      %977 = vmatmul.mubr.bf16.gmra.mrb[0].mxu0 %v939
      %v978 = vpop.f32.mrb[0].mxu0
      %v979 = vadd.f32 0.0, %v978
      %v980 = vpop.f32.mrb[0].mxu0
      %v981 = vpop.f32.mrb[0].mxu0
      %v982 = vpop.f32.mrb[0].mxu0
      %983 = vdwg.mxu0
      %v984 = vmul.f32 %v831, 0.25
      %v985 = vmul.f32 %v879, 0.25
      %v986 = vmul.f32 %v929, 0.25
      %v987 = vmul.f32 %v979, 0.25
      %v990 = vlaneseq
      %v991 = vshrl.u32 %v990, 7
      %v992 = vsub.s32 0, %v991
      %v993 = vrot.slane %v785, %v992
      %v994 = vlaneseq
      %v995 = vshrl.u32 %v994, 7
      %v996 = vsub.s32 0, %v995
      %v997 = vrot.slane %v786, %v996
      %v1000 = vadd.f32 %v984, %v993
      %v1001 = vadd.f32 %v985, %v997
      %v1002 = vadd.f32 %v986, %v993
      %v1003 = vadd.f32 %v987, %v997
      %vm1004 = vcmask 64512
      %v1005 = vsel %vm1004, %v1000, -inf
      %1006 = vmax.xlane.f32.xlu0 %v1005
      %v1007 = vpop.xlane.xlu0 %1006
      %v1008 = vsel %vm1004, %v1001, -inf
      %1009 = vmax.xlane.f32.xlu0 %v1008
      %v1010 = vpop.xlane.xlu0 %1009
      %v1011 = vsel %vm1004, %v1002, -inf
      %1012 = vmax.xlane.f32.xlu0 %v1011
      %v1013 = vpop.xlane.xlu0 %1012
      %v1014 = vsel %vm1004, %v1003, -inf
      %1015 = vmax.xlane.f32.xlu0 %v1014
      %v1016 = vpop.xlane.xlu0 %1015
      %v1017 = vsub.f32 %v1000, %v1007
      %v1018 = vsub.f32 %v1001, %v1010
      %v1019 = vsub.f32 %v1002, %v1013
      %v1020 = vsub.f32 %v1003, %v1016
      %v1021 = vmul.f32 %v1017, 1.442695
      %v1022 = vpow.pop %v1021
      %v1023 = vmul.f32 %v1018, 1.442695
      %v1024 = vpow.pop %v1023
      %v1025 = vmul.f32 %v1019, 1.442695
      %v1026 = vpow.pop %v1025
      %v1027 = vmul.f32 %v1020, 1.442695
      %v1028 = vpow.pop %v1027
      %v1029 = vsel %vm1004, %v1022, 0.0
      %1030 = vadd.xlane.f32.xlu0 %v1029
      %v1031 = vpop.xlane.xlu0 %1030
      %v1032 = vsel %vm1004, %v1024, 0.0
      %1033 = vadd.xlane.f32.xlu0 %v1032
      %v1034 = vpop.xlane.xlu0 %1033
      %v1035 = vsel %vm1004, %v1026, 0.0
      %1036 = vadd.xlane.f32.xlu0 %v1035
      %v1037 = vpop.xlane.xlu0 %1036
      %v1038 = vsel %vm1004, %v1028, 0.0
      %1039 = vadd.xlane.f32.xlu0 %v1038
      %v1040 = vpop.xlane.xlu0 %1039
      %v1041 = vrcp.pop %v1031
      %v1042 = vrcp.pop %v1034
      %v1043 = vrcp.pop %v1037
      %v1044 = vrcp.pop %v1040
      %v1045 = vmul.f32 %v1022, %v1041
      %v1046 = vmul.f32 %v1024, %v1042
      %v1047 = vmul.f32 %v1026, %v1043
      %v1048 = vmul.f32 %v1028, %v1044
      %v1049 = vpack.c.bf16 %v1045, %v1045
      %v1050 = vpack.c.bf16 %v1046, %v1046
      %v1051 = vpack.c.bf16 %v1047, %v1047
      %v1052 = vpack.c.bf16 %v1048, %v1048
      %1053 = vrot.lane.b32.xlu0 %v779, 64
      %v1054 = vpop.permute.xlu0 %1053
      %v1056 = vsel %vm1004, %v1049, 0
      %vm1058 = vcmask 1043456
      %v1060 = vsel %vm1058, %v1054, 0
      %1062 = vmatprep.subr.bf16.mxu0 0
      %1063 = vmatpush1.bf16.msra.mxu0 %v1060
      %1064 = vmatprep.subr.bf16.mxu0 0
      %1065 = vmatpush1.bf16.msra.mxu0 0
      %1066 = vmatprep.subr.bf16.mxu0 0
      %1067 = vmatpush1.bf16.msra.mxu0 0
      %1068 = vmatprep.subr.bf16.mxu0 0
      %1069 = vmatpush1.bf16.msra.mxu0 0
      %1070 = vmatprep.subr.bf16.mxu0 0
      %1071 = vmatpush1.bf16.msra.mxu0 0
      %1072 = vmatprep.subr.bf16.mxu0 0
      %1073 = vmatpush1.bf16.msra.mxu0 0
      %1074 = vmatprep.subr.bf16.mxu0 0
      %1075 = vmatpush1.bf16.msra.mxu0 0
      %1076 = vmatprep.subr.bf16.mxu0 0
      %1077 = vmatpush1.bf16.msra.mxu0 0
      %1078 = vmatprep.subr.bf16.mxu0 0
      %1079 = vmatpush1.bf16.msra.mxu0 0
      %1080 = vmatprep.subr.bf16.mxu0 0
      %1081 = vmatpush1.bf16.msra.mxu0 0
      %1082 = vmatprep.subr.bf16.mxu0 0
      %1083 = vmatpush1.bf16.msra.mxu0 0
      %1084 = vmatprep.subr.bf16.mxu0 0
      %1085 = vmatpush1.bf16.msra.mxu0 0
      %1086 = vmatprep.subr.bf16.mxu0 0
      %1087 = vmatpush1.bf16.msra.mxu0 0
      %1088 = vmatprep.subr.bf16.mxu0 0
      %1089 = vmatpush1.bf16.msra.mxu0 0
      %1090 = vmatprep.subr.bf16.mxu0 0
      %1091 = vmatpush1.bf16.msra.mxu0 0
      %1092 = vmatprep.subr.bf16.mxu0 0
      %1093 = vmatpush1.bf16.msra.mxu0 0
      %1094 = vmatprep.mubr.bf16.mxu0 0
      %1095 = vmatmul.mubr.bf16.gmra.mrb[0].mxu0 %v1056
      %v1096 = vpop.f32.mrb[0].mxu0
      %v1097 = vadd.f32 0.0, %v1096
      %v1098 = vpop.f32.mrb[0].mxu0
      %v1099 = vpop.f32.mrb[0].mxu0
      %v1100 = vpop.f32.mrb[0].mxu0
      %1101 = vdwg.mxu0
      %1102 = vrot.lane.b32.xlu0 %v780, 64
      %v1103 = vpop.permute.xlu0 %1102
      %v1105 = vsel %vm1004, %v1050, 0
      %v1108 = vsel %vm1058, %v1103, 0
      %1110 = vmatprep.subr.bf16.mxu0 0
      %1111 = vmatpush1.bf16.msra.mxu0 %v1108
      %1112 = vmatprep.subr.bf16.mxu0 0
      %1113 = vmatpush1.bf16.msra.mxu0 0
      %1114 = vmatprep.subr.bf16.mxu0 0
      %1115 = vmatpush1.bf16.msra.mxu0 0
      %1116 = vmatprep.subr.bf16.mxu0 0
      %1117 = vmatpush1.bf16.msra.mxu0 0
      %1118 = vmatprep.subr.bf16.mxu0 0
      %1119 = vmatpush1.bf16.msra.mxu0 0
      %1120 = vmatprep.subr.bf16.mxu0 0
      %1121 = vmatpush1.bf16.msra.mxu0 0
      %1122 = vmatprep.subr.bf16.mxu0 0
      %1123 = vmatpush1.bf16.msra.mxu0 0
      %1124 = vmatprep.subr.bf16.mxu0 0
      %1125 = vmatpush1.bf16.msra.mxu0 0
      %1126 = vmatprep.subr.bf16.mxu0 0
      %1127 = vmatpush1.bf16.msra.mxu0 0
      %1128 = vmatprep.subr.bf16.mxu0 0
      %1129 = vmatpush1.bf16.msra.mxu0 0
      %1130 = vmatprep.subr.bf16.mxu0 0
      %1131 = vmatpush1.bf16.msra.mxu0 0
      %1132 = vmatprep.subr.bf16.mxu0 0
      %1133 = vmatpush1.bf16.msra.mxu0 0
      %1134 = vmatprep.subr.bf16.mxu0 0
      %1135 = vmatpush1.bf16.msra.mxu0 0
      %1136 = vmatprep.subr.bf16.mxu0 0
      %1137 = vmatpush1.bf16.msra.mxu0 0
      %1138 = vmatprep.subr.bf16.mxu0 0
      %1139 = vmatpush1.bf16.msra.mxu0 0
      %1140 = vmatprep.subr.bf16.mxu0 0
      %1141 = vmatpush1.bf16.msra.mxu0 0
      %1142 = vmatprep.mubr.bf16.mxu0 0
      %1143 = vmatmul.mubr.bf16.gmra.mrb[0].mxu0 %v1105
      %v1144 = vpop.f32.mrb[0].mxu0
      %v1145 = vadd.f32 0.0, %v1144
      %v1146 = vpop.f32.mrb[0].mxu0
      %v1147 = vpop.f32.mrb[0].mxu0
      %v1148 = vpop.f32.mrb[0].mxu0
      %1149 = vdwg.mxu0
      %1150 = vrot.lane.b32.xlu0 %v885, 64
      %v1151 = vpop.permute.xlu0 %1150
      %v1153 = vsel %vm1004, %v1051, 0
      %v1156 = vsel %vm1058, %v1151, 0
      %1158 = vmatprep.subr.bf16.mxu0 0
      %1159 = vmatpush1.bf16.msra.mxu0 %v1156
      %1160 = vmatprep.subr.bf16.mxu0 0
      %1161 = vmatpush1.bf16.msra.mxu0 0
      %1162 = vmatprep.subr.bf16.mxu0 0
      %1163 = vmatpush1.bf16.msra.mxu0 0
      %1164 = vmatprep.subr.bf16.mxu0 0
      %1165 = vmatpush1.bf16.msra.mxu0 0
      %1166 = vmatprep.subr.bf16.mxu0 0
      %1167 = vmatpush1.bf16.msra.mxu0 0
      %1168 = vmatprep.subr.bf16.mxu0 0
      %1169 = vmatpush1.bf16.msra.mxu0 0
      %1170 = vmatprep.subr.bf16.mxu0 0
      %1171 = vmatpush1.bf16.msra.mxu0 0
      %1172 = vmatprep.subr.bf16.mxu0 0
      %1173 = vmatpush1.bf16.msra.mxu0 0
      %1174 = vmatprep.subr.bf16.mxu0 0
      %1175 = vmatpush1.bf16.msra.mxu0 0
      %1176 = vmatprep.subr.bf16.mxu0 0
      %1177 = vmatpush1.bf16.msra.mxu0 0
      %1178 = vmatprep.subr.bf16.mxu0 0
      %1179 = vmatpush1.bf16.msra.mxu0 0
      %1180 = vmatprep.subr.bf16.mxu0 0
      %1181 = vmatpush1.bf16.msra.mxu0 0
      %1182 = vmatprep.subr.bf16.mxu0 0
      %1183 = vmatpush1.bf16.msra.mxu0 0
      %1184 = vmatprep.subr.bf16.mxu0 0
      %1185 = vmatpush1.bf16.msra.mxu0 0
      %1186 = vmatprep.subr.bf16.mxu0 0
      %1187 = vmatpush1.bf16.msra.mxu0 0
      %1188 = vmatprep.subr.bf16.mxu0 0
      %1189 = vmatpush1.bf16.msra.mxu0 0
      %1190 = vmatprep.mubr.bf16.mxu0 0
      %1191 = vmatmul.mubr.bf16.gmra.mrb[0].mxu0 %v1153
      %v1192 = vpop.f32.mrb[0].mxu0
      %v1193 = vadd.f32 0.0, %v1192
      %v1194 = vpop.f32.mrb[0].mxu0
      %v1195 = vpop.f32.mrb[0].mxu0
      %v1196 = vpop.f32.mrb[0].mxu0
      %1197 = vdwg.mxu0
      %1198 = vrot.lane.b32.xlu0 %v935, 64
      %v1199 = vpop.permute.xlu0 %1198
      %v1201 = vsel %vm1004, %v1052, 0
      %v1204 = vsel %vm1058, %v1199, 0
      %1206 = vmatprep.subr.bf16.mxu0 0
      %1207 = vmatpush1.bf16.msra.mxu0 %v1204
      %1208 = vmatprep.subr.bf16.mxu0 0
      %1209 = vmatpush1.bf16.msra.mxu0 0
      %1210 = vmatprep.subr.bf16.mxu0 0
      %1211 = vmatpush1.bf16.msra.mxu0 0
      %1212 = vmatprep.subr.bf16.mxu0 0
      %1213 = vmatpush1.bf16.msra.mxu0 0
      %1214 = vmatprep.subr.bf16.mxu0 0
      %1215 = vmatpush1.bf16.msra.mxu0 0
      %1216 = vmatprep.subr.bf16.mxu0 0
      %1217 = vmatpush1.bf16.msra.mxu0 0
      %1218 = vmatprep.subr.bf16.mxu0 0
      %1219 = vmatpush1.bf16.msra.mxu0 0
      %1220 = vmatprep.subr.bf16.mxu0 0
      %1221 = vmatpush1.bf16.msra.mxu0 0
      %1222 = vmatprep.subr.bf16.mxu0 0
      %1223 = vmatpush1.bf16.msra.mxu0 0
      %1224 = vmatprep.subr.bf16.mxu0 0
      %1225 = vmatpush1.bf16.msra.mxu0 0
      %1226 = vmatprep.subr.bf16.mxu0 0
      %1227 = vmatpush1.bf16.msra.mxu0 0
      %1228 = vmatprep.subr.bf16.mxu0 0
      %1229 = vmatpush1.bf16.msra.mxu0 0
      %1230 = vmatprep.subr.bf16.mxu0 0
      %1231 = vmatpush1.bf16.msra.mxu0 0
      %1232 = vmatprep.subr.bf16.mxu0 0
      %1233 = vmatpush1.bf16.msra.mxu0 0
      %1234 = vmatprep.subr.bf16.mxu0 0
      %1235 = vmatpush1.bf16.msra.mxu0 0
      %1236 = vmatprep.subr.bf16.mxu0 0
      %1237 = vmatpush1.bf16.msra.mxu0 0
      %1238 = vmatprep.mubr.bf16.mxu0 0
      %1239 = vmatmul.mubr.bf16.gmra.mrb[0].mxu0 %v1201
      %v1240 = vpop.f32.mrb[0].mxu0
      %v1241 = vadd.f32 0.0, %v1240
      %v1242 = vpop.f32.mrb[0].mxu0
      %v1243 = vpop.f32.mrb[0].mxu0
      %v1244 = vpop.f32.mrb[0].mxu0
      %1245 = vdwg.mxu0
      %1248 = vrot.lane.b32.xlu0 %v1193, 16
      %v1249 = vpop.permute.xlu0 %1248
      %1250 = vrot.lane.b32.xlu0 %v1241, 16
      %v1251 = vpop.permute.xlu0 %1250
      %v1254 = vsel %vm789, %v1097, %v1249
      %v1255 = vsel %vm789, %v1145, %v1251
      %v1256 = vpack.c.bf16 %v1255, %v1254
      %v1257 = vld [vmem:[%s656] sm:$0xf]
      %v1258 = vld [vmem:[%s656 + $0x4] sm:$0xf]
      %v1259 = vld [vmem:[%s656 + $0x8] sm:$0xf]
      %v1260 = vld [vmem:[%s656 + $0xc] sm:$0xf]
      %v1261 = vld [vmem:[%s659] sm:$0x1]
      %v1263 = vlaneseq
      %v1264 = vshrl.u32 %v1263, 7
      %v1265 = vsub.s32 0, %v1264
      %v1266 = vrot.slane %v1261, %v1265
      %v1272 = vunpack.c.l.b16 %v1257
      %v1273 = vunpack.c.l.b16 %v1258
      %v1274 = vunpack.c.l.b16 %v1259
      %v1275 = vunpack.c.l.b16 %v1260
      %v1276 = vpack.c.b16 %v1273, %v1272
      %v1277 = vpack.c.b16 %v1275, %v1274
      %v1281 = vsel %vm730, %v1256, 0
      %1283 = vmatprep.subr.bf16.mxu0 0
      %1284 = vmatpush1.bf16.msra.mxu0 %v1276
      %1285 = vmatprep.subr.bf16.mxu0 0
      %1286 = vmatpush1.bf16.msra.mxu0 %v1277
      %1287 = vmatprep.subr.bf16.mxu0 0
      %1288 = vmatpush1.bf16.msra.mxu0 0
      %1289 = vmatprep.subr.bf16.mxu0 0
      %1290 = vmatpush1.bf16.msra.mxu0 0
      %1291 = vmatprep.subr.bf16.mxu0 0
      %1292 = vmatpush1.bf16.msra.mxu0 0
      %1293 = vmatprep.subr.bf16.mxu0 0
      %1294 = vmatpush1.bf16.msra.mxu0 0
      %1295 = vmatprep.subr.bf16.mxu0 0
      %1296 = vmatpush1.bf16.msra.mxu0 0
      %1297 = vmatprep.subr.bf16.mxu0 0
      %1298 = vmatpush1.bf16.msra.mxu0 0
      %1299 = vmatprep.subr.bf16.mxu0 0
      %1300 = vmatpush1.bf16.msra.mxu0 0
      %1301 = vmatprep.subr.bf16.mxu0 0
      %1302 = vmatpush1.bf16.msra.mxu0 0
      %1303 = vmatprep.subr.bf16.mxu0 0
      %1304 = vmatpush1.bf16.msra.mxu0 0
      %1305 = vmatprep.subr.bf16.mxu0 0
      %1306 = vmatpush1.bf16.msra.mxu0 0
      %1307 = vmatprep.subr.bf16.mxu0 0
      %1308 = vmatpush1.bf16.msra.mxu0 0
      %1309 = vmatprep.subr.bf16.mxu0 0
      %1310 = vmatpush1.bf16.msra.mxu0 0
      %1311 = vmatprep.subr.bf16.mxu0 0
      %1312 = vmatpush1.bf16.msra.mxu0 0
      %1313 = vmatprep.subr.bf16.mxu0 0
      %1314 = vmatpush1.bf16.msra.mxu0 0
      %1315 = vmatprep.mubr.bf16.mxu0 0
      %1316 = vmatmul.mubr.bf16.gmra.mrb[0].mxu0 %v1281
      %v1317 = vpop.f32.mrb[0].mxu0
      %v1318 = vadd.f32 %v1266, %v1317
      %v1319 = vpop.f32.mrb[0].mxu0
      %v1320 = vpop.f32.mrb[0].mxu0
      %v1321 = vadd.f32 %v1266, %v1320
      %v1322 = vpop.f32.mrb[0].mxu0
      %1323 = vdwg.mxu0
      %v1324 = vadd.f32 %v704, %v1318
      %v1325 = vadd.f32 %v705, %v1321
      %v1326 = vld [vmem:[%s662] sm:$0x1]
      %v1327 = vld [vmem:[%s665] sm:$0x1]
      %v1328 = vsel %vm730, %v1324, 0.0
      %1329 = vadd.xlane.f32.xlu0 %v1328
      %v1330 = vpop.xlane.xlu0 %1329
      %v1331 = vsel %vm730, %v1325, 0.0
      %1332 = vadd.xlane.f32.xlu0 %v1331
      %v1333 = vpop.xlane.xlu0 %1332
      %v1334 = vrcp.pop 32.0
      %v1335 = vmul.f32 %v1330, %v1334
      %v1336 = vmul.f32 %v1333, %v1334
      %v1337 = vsub.f32 %v1324, %v1335
      %v1338 = vsub.f32 %v1325, %v1336
      %v1339 = vmul.f32 %v1337, %v1337
      %v1340 = vmul.f32 %v1338, %v1338
      %v1341 = vsel %vm730, %v1339, 0.0
      %1342 = vadd.xlane.f32.xlu0 %v1341
      %v1343 = vpop.xlane.xlu0 %1342
      %v1344 = vsel %vm730, %v1340, 0.0
      %1345 = vadd.xlane.f32.xlu0 %v1344
      %v1346 = vpop.xlane.xlu0 %1345
      %v1347 = vmul.f32 %v1343, %v1334
      %v1348 = vmul.f32 %v1346, %v1334
      %v1349 = vadd.f32 %v1347, 1e-05
      %v1350 = vadd.f32 %v1348, 1e-05
      %v1351 = vrsqrt.pop %v1349
      %v1352 = vrsqrt.pop %v1350
      %v1353 = vmul.f32 %v1337, %v1351
      %v1354 = vmul.f32 %v1338, %v1352
      %v1356 = vlaneseq
      %v1357 = vshrl.u32 %v1356, 7
      %v1358 = vsub.s32 0, %v1357
      %v1359 = vrot.slane %v1326, %v1358
      %v1361 = vmul.f32 %v1353, %v1359
      %v1362 = vmul.f32 %v1354, %v1359
      %v1364 = vlaneseq
      %v1365 = vshrl.u32 %v1364, 7
      %v1366 = vsub.s32 0, %v1365
      %v1367 = vrot.slane %v1327, %v1366
      %v1369 = vadd.f32 %v1361, %v1367
      %v1370 = vadd.f32 %v1362, %v1367
      %v1371 = vpack.c.bf16 %v1370, %v1369
      %v1372 = vld [vmem:[%s670] sm:$0xf]
      %v1373 = vld [vmem:[%s670 + $0x4] sm:$0xf]
      %v1374 = vld [vmem:[%s670 + $0x8] sm:$0xf]
      %v1375 = vld [vmem:[%s670 + $0xc] sm:$0xf]
      %v1376 = vld [vmem:[%s673] sm:$0x1]
      %v1378 = vlaneseq
      %v1379 = vshrl.u32 %v1378, 7
      %v1380 = vsub.s32 0, %v1379
      %v1381 = vrot.slane %v1376, %v1380
      %v1387 = vunpack.c.l.b16 %v1372
      %v1388 = vunpack.c.l.b16 %v1373
      %v1389 = vunpack.c.l.b16 %v1374
      %v1390 = vunpack.c.l.b16 %v1375
      %v1391 = vpack.c.b16 %v1388, %v1387
      %v1392 = vpack.c.b16 %v1390, %v1389
      %v1396 = vsel %vm730, %v1371, 0
      %1398 = vmatprep.subr.bf16.mxu0 0
      %1399 = vmatpush1.bf16.msra.mxu0 %v1391
      %1400 = vmatprep.subr.bf16.mxu0 0
      %1401 = vmatpush1.bf16.msra.mxu0 %v1392
      %1402 = vmatprep.subr.bf16.mxu0 0
      %1403 = vmatpush1.bf16.msra.mxu0 0
      %1404 = vmatprep.subr.bf16.mxu0 0
      %1405 = vmatpush1.bf16.msra.mxu0 0
      %1406 = vmatprep.subr.bf16.mxu0 0
      %1407 = vmatpush1.bf16.msra.mxu0 0
      %1408 = vmatprep.subr.bf16.mxu0 0
      %1409 = vmatpush1.bf16.msra.mxu0 0
      %1410 = vmatprep.subr.bf16.mxu0 0
      %1411 = vmatpush1.bf16.msra.mxu0 0
      %1412 = vmatprep.subr.bf16.mxu0 0
      %1413 = vmatpush1.bf16.msra.mxu0 0
      %1414 = vmatprep.subr.bf16.mxu0 0
      %1415 = vmatpush1.bf16.msra.mxu0 0
      %1416 = vmatprep.subr.bf16.mxu0 0
      %1417 = vmatpush1.bf16.msra.mxu0 0
      %1418 = vmatprep.subr.bf16.mxu0 0
      %1419 = vmatpush1.bf16.msra.mxu0 0
      %1420 = vmatprep.subr.bf16.mxu0 0
      %1421 = vmatpush1.bf16.msra.mxu0 0
      %1422 = vmatprep.subr.bf16.mxu0 0
      %1423 = vmatpush1.bf16.msra.mxu0 0
      %1424 = vmatprep.subr.bf16.mxu0 0
      %1425 = vmatpush1.bf16.msra.mxu0 0
      %1426 = vmatprep.subr.bf16.mxu0 0
      %1427 = vmatpush1.bf16.msra.mxu0 0
      %1428 = vmatprep.subr.bf16.mxu0 0
      %1429 = vmatpush1.bf16.msra.mxu0 0
      %1430 = vmatprep.mubr.bf16.mxu0 0
      %1431 = vmatmul.mubr.bf16.gmra.mrb[0].mxu0 %v1396
      %v1432 = vpop.f32.mrb[0].mxu0
      %v1433 = vadd.f32 %v1381, %v1432
      %v1434 = vpop.f32.mrb[0].mxu0
      %v1435 = vpop.f32.mrb[0].mxu0
      %v1436 = vadd.f32 %v1381, %v1435
      %v1437 = vpop.f32.mrb[0].mxu0
      %1438 = vdwg.mxu0
      %v1439 = vmul.f32 %v1433, 0.5
      %v1440 = vmul.f32 %v1436, 0.5
      %v1441 = vmul.f32 %v1433, 0.70710677
      %v1442 = vmul.f32 %v1436, 0.70710677
      %v1443 = verf.f32.pop %v1441
      %v1444 = verf.f32.pop %v1442
      %v1445 = vadd.f32 %v1443, 1.0
      %v1446 = vadd.f32 %v1444, 1.0
      %v1447 = vmul.f32 %v1439, %v1445
      %v1448 = vmul.f32 %v1440, %v1446
      %v1449 = vpack.c.bf16 %v1448, %v1447
      %v1450 = vld [vmem:[%s678] sm:$0xf]
      %v1451 = vld [vmem:[%s678 + $0x4] sm:$0xf]
      %v1452 = vld [vmem:[%s678 + $0x8] sm:$0xf]
      %v1453 = vld [vmem:[%s678 + $0xc] sm:$0xf]
      %v1454 = vld [vmem:[%s678 + $0x10] sm:$0xf]
      %v1455 = vld [vmem:[%s678 + $0x14] sm:$0xf]
      %v1456 = vld [vmem:[%s678 + $0x18] sm:$0xf]
      %v1457 = vld [vmem:[%s678 + $0x1c] sm:$0xf]
      %v1458 = vld [vmem:[%s678 + $0x20] sm:$0xf]
      %v1459 = vld [vmem:[%s678 + $0x24] sm:$0xf]
      %v1460 = vld [vmem:[%s678 + $0x28] sm:$0xf]
      %v1461 = vld [vmem:[%s678 + $0x2c] sm:$0xf]
      %v1462 = vld [vmem:[%s678 + $0x30] sm:$0xf]
      %v1463 = vld [vmem:[%s678 + $0x34] sm:$0xf]
      %v1464 = vld [vmem:[%s678 + $0x38] sm:$0xf]
      %v1465 = vld [vmem:[%s678 + $0x3c] sm:$0xf]
      %v1466 = vld [vmem:[%s681] sm:$0x1]
      %v1468 = vlaneseq
      %v1469 = vshrl.u32 %v1468, 7
      %v1470 = vsub.s32 0, %v1469
      %v1471 = vrot.slane %v1466, %v1470
      %v1489 = vunpack.c.l.b16 %v1450
      %v1490 = vunpack.c.l.b16 %v1451
      %v1491 = vunpack.c.l.b16 %v1452
      %v1492 = vunpack.c.l.b16 %v1453
      %v1493 = vunpack.c.l.b16 %v1454
      %v1494 = vunpack.c.l.b16 %v1455
      %v1495 = vunpack.c.l.b16 %v1456
      %v1496 = vunpack.c.l.b16 %v1457
      %v1497 = vunpack.c.l.b16 %v1458
      %v1498 = vunpack.c.l.b16 %v1459
      %v1499 = vunpack.c.l.b16 %v1460
      %v1500 = vunpack.c.l.b16 %v1461
      %v1501 = vunpack.c.l.b16 %v1462
      %v1502 = vunpack.c.l.b16 %v1463
      %v1503 = vunpack.c.l.b16 %v1464
      %v1504 = vunpack.c.l.b16 %v1465
      %v1505 = vpack.c.b16 %v1490, %v1489
      %v1506 = vpack.c.b16 %v1492, %v1491
      %v1507 = vpack.c.b16 %v1494, %v1493
      %v1508 = vpack.c.b16 %v1496, %v1495
      %v1509 = vpack.c.b16 %v1498, %v1497
      %v1510 = vpack.c.b16 %v1500, %v1499
      %v1511 = vpack.c.b16 %v1502, %v1501
      %v1512 = vpack.c.b16 %v1504, %v1503
      %1521 = vmatprep.subr.bf16.mxu0 0
      %1522 = vmatpush1.bf16.msra.mxu0 %v1505
      %1523 = vmatprep.subr.bf16.mxu0 0
      %1524 = vmatpush1.bf16.msra.mxu0 %v1506
      %1525 = vmatprep.subr.bf16.mxu0 0
      %1526 = vmatpush1.bf16.msra.mxu0 %v1507
      %1527 = vmatprep.subr.bf16.mxu0 0
      %1528 = vmatpush1.bf16.msra.mxu0 %v1508
      %1529 = vmatprep.subr.bf16.mxu0 0
      %1530 = vmatpush1.bf16.msra.mxu0 %v1509
      %1531 = vmatprep.subr.bf16.mxu0 0
      %1532 = vmatpush1.bf16.msra.mxu0 %v1510
      %1533 = vmatprep.subr.bf16.mxu0 0
      %1534 = vmatpush1.bf16.msra.mxu0 %v1511
      %1535 = vmatprep.subr.bf16.mxu0 0
      %1536 = vmatpush1.bf16.msra.mxu0 %v1512
      %1537 = vmatprep.subr.bf16.mxu0 0
      %1538 = vmatpush1.bf16.msra.mxu0 0
      %1539 = vmatprep.subr.bf16.mxu0 0
      %1540 = vmatpush1.bf16.msra.mxu0 0
      %1541 = vmatprep.subr.bf16.mxu0 0
      %1542 = vmatpush1.bf16.msra.mxu0 0
      %1543 = vmatprep.subr.bf16.mxu0 0
      %1544 = vmatpush1.bf16.msra.mxu0 0
      %1545 = vmatprep.subr.bf16.mxu0 0
      %1546 = vmatpush1.bf16.msra.mxu0 0
      %1547 = vmatprep.subr.bf16.mxu0 0
      %1548 = vmatpush1.bf16.msra.mxu0 0
      %1549 = vmatprep.subr.bf16.mxu0 0
      %1550 = vmatpush1.bf16.msra.mxu0 0
      %1551 = vmatprep.subr.bf16.mxu0 0
      %1552 = vmatpush1.bf16.msra.mxu0 0
      %1553 = vmatprep.mubr.bf16.mxu0 0
      %1554 = vmatmul.mubr.bf16.gmra.mrb[0].mxu0 %v1449
      %v1555 = vpop.f32.mrb[0].mxu0
      %v1556 = vadd.f32 %v1471, %v1555
      %v1557 = vpop.f32.mrb[0].mxu0
      %v1558 = vpop.f32.mrb[0].mxu0
      %v1559 = vadd.f32 %v1471, %v1558
      %v1560 = vpop.f32.mrb[0].mxu0
      %1561 = vdwg.mxu0
      %v1562 = vadd.f32 %v1369, %v1556
      %v1563 = vadd.f32 %v1370, %v1559
      %v1564 = vld [vmem:[%s684] sm:$0x1]
      %v1565 = vld [vmem:[%s687] sm:$0x1]
      %v1566 = vsel %vm730, %v1562, 0.0
      %1567 = vadd.xlane.f32.xlu0 %v1566
      %v1568 = vpop.xlane.xlu0 %1567
      %v1569 = vsel %vm730, %v1563, 0.0
      %1570 = vadd.xlane.f32.xlu0 %v1569
      %v1571 = vpop.xlane.xlu0 %1570
      %v1572 = vmul.f32 %v1568, %v1334
      %v1573 = vmul.f32 %v1571, %v1334
      %v1574 = vsub.f32 %v1562, %v1572
      %v1575 = vsub.f32 %v1563, %v1573
      %v1576 = vmul.f32 %v1574, %v1574
      %v1577 = vmul.f32 %v1575, %v1575
      %v1578 = vsel %vm730, %v1576, 0.0
      %1579 = vadd.xlane.f32.xlu0 %v1578
      %v1580 = vpop.xlane.xlu0 %1579
      %v1581 = vsel %vm730, %v1577, 0.0
      %1582 = vadd.xlane.f32.xlu0 %v1581
      %v1583 = vpop.xlane.xlu0 %1582
      %v1584 = vmul.f32 %v1580, %v1334
      %v1585 = vmul.f32 %v1583, %v1334
      %v1586 = vadd.f32 %v1584, 1e-05
      %v1587 = vadd.f32 %v1585, 1e-05
      %v1588 = vrsqrt.pop %v1586
      %v1589 = vrsqrt.pop %v1587
      %v1590 = vmul.f32 %v1574, %v1588
      %v1591 = vmul.f32 %v1575, %v1589
      %v1593 = vlaneseq
      %v1594 = vshrl.u32 %v1593, 7
      %v1595 = vsub.s32 0, %v1594
      %v1596 = vrot.slane %v1564, %v1595
      %v1598 = vmul.f32 %v1590, %v1596
      %v1599 = vmul.f32 %v1591, %v1596
      %v1601 = vlaneseq
      %v1602 = vshrl.u32 %v1601, 7
      %v1603 = vsub.s32 0, %v1602
      %v1604 = vrot.slane %v1565, %v1603
      %v1606 = vadd.f32 %v1598, %v1604
      %v1607 = vadd.f32 %v1599, %v1604
      %1608 = vst.msk [vmem:[%s692] sm:$0xff] %vm730, %v1606
      %1609 = vst.msk [vmem:[%s692 + $0x8] sm:$0xff] %vm730, %v1607
      %s1610 = smul.u32 2, %s29
      %p1611 = scmp.lt.s32.totalorder %s1610, 1
      %s1612 = scalar_select %p1611, %s1610, 1
      %s1613 = smul.addr %s1612, 8
      %s1614 = scalar_lea.vmem %s14, %s1613
      // Predicated region
      $region81: #{bert4rec_forward.5} parent=75 // pred_check
        %p1615 = pneg %p419
      $region82: #{bert4rec_forward.5} parent=75 // pred_check_branch
        %1617 = sbr.rel (%p1615) target = $region84
      $region83: #{bert4rec_forward.5} parent=75 // pred_region
        %s1618 = smul.u32 2, %s29
      $region84: #{bert4rec_forward.5} parent=75 // pred_fallthru
        _
      // Predicated region
      $region85: #{bert4rec_forward.5} parent=75 // pred_check
        %p1619 = pneg %p419
      $region86: #{bert4rec_forward.5} parent=75 // pred_check_branch
        %1621 = sbr.rel (%p1619) target = $region88
      $region87: #{bert4rec_forward.5} parent=75 // pred_region
        %s1622 = smul.u32 2, %s29
        %p1623 = scmp.lt.s32.totalorder %s1622, 1
        %s1624 = scalar_select %p1623, %s1622, 1
        %s1625 = smul.addr %s1624, 8
        %s1626 = scalar_lea.vmem %s14, %s1625
      $region88: #{bert4rec_forward.5} parent=75 // pred_fallthru
        _
    $region76: #{bert4rec_forward.5} parent=5 // pred_fallthru
      _
    %p1627 = scmp.le.s32.totalorder 2, %s20
    // Predicated region
    $region89: #{bert4rec_forward.5} parent=5 // pred_check
      %p1628 = pneg %p1627
    $region90: #{bert4rec_forward.5} parent=5 // pred_check_branch
      %1630 = sbr.rel (%p1628) target = $region92
    $region91: #{bert4rec_forward.5} parent=5 // pred_region
      %s1631 = ssub.s32 %s20, 2
    $region92: #{bert4rec_forward.5} parent=5 // pred_fallthru
      _
  $region6: #{bert4rec_forward.5} parent=0 // loop_footer
    %s24 = sadd.s32 1, %s20
  $region7: #{bert4rec_forward.5} parent=0 // loop_footer_branch
    %19 = sbr.rel target = $region3
  $region8: #{bert4rec_forward.5} parent=0 // loop_exit
    _

</llo_original>
